<compile_context>
chip_gen: v7x
topology: tpu7x:2x2x1
jax: 0.10.0
libtpu: 0.0.40
codegen_flags: <defaults>
</compile_context>

<pallas_src>
import functools

import jax
import jax.numpy as jnp
from jax.experimental import pallas as pl
from jax.experimental.pallas import tpu as pltpu

LANE = 128  # pad the output (action) dim to a multiple of this for dense stores


def emb_ann_kernel(idx_ref, emb_ref, w_ref, b_ref, o_ref):
    TM = idx_ref.shape[0]
    S = emb_ref.shape[0]
    # --- Embedding gather as a one-hot matmul on the MXU ---------------------
    idx = idx_ref[...]                                                # (TM, 1) int32
    oh = (jax.lax.broadcasted_iota(jnp.int32, (TM, S), 1) == idx).astype(jnp.float32)
    x = jnp.dot(oh, emb_ref[...],
                preferred_element_type=jnp.float32,
                precision=jax.lax.Precision.HIGHEST)                  # (TM, H) exact rows
    # --- SiLU: x * sigmoid(x), f32 (EUP exp path; f32 also required on v5e) ---
    x = x * jax.nn.sigmoid(x)
    # --- Linear layer on the MXU, f32 accumulation; output is lane-padded -----
    o_ref[...] = (jnp.dot(x, w_ref[...],
                          preferred_element_type=jnp.float32,
                          precision=jax.lax.Precision.HIGHEST)
                  + b_ref[...]).astype(o_ref.dtype)


def make_emb_ann_params(emb_table, w, b):
    """One-time parameter prep (padding hoisted out of the forward path).

    emb_table: (S, H) f32; w: (H, A) f32 (Linear.weight^T); b: (A,) f32.
    Returns (emb_table_f32, w_pad (H, A_pad), b_pad (1, A_pad), A).
    """
    H, A = w.shape
    A_pad = max(LANE, ((A + LANE - 1) // LANE) * LANE)
    w_pad = jnp.zeros((H, A_pad), jnp.float32).at[:, :A].set(w.astype(jnp.float32))
    b_pad = jnp.zeros((1, A_pad), jnp.float32).at[:, :A].set(b.astype(jnp.float32))
    return emb_table.astype(jnp.float32), w_pad, b_pad, A


@functools.partial(jax.jit, static_argnums=(4, 5))
def _emb_ann_call(idx2, emb_table, w_pad, b_pad, tm, a_out):
    """idx2: (M_pad, 1) int32, M_pad a multiple of tm.  Returns (M_pad, a_out)."""
    M_pad = idx2.shape[0]
    S, H = emb_table.shape
    A_pad = w_pad.shape[1]

    grid_spec = pl.GridSpec(
        grid=(M_pad // tm,),
        in_specs=[
            pl.BlockSpec((tm, 1), lambda i: (i, 0)),        # indices: streams with grid
            pl.BlockSpec((S, H), lambda i: (0, 0)),         # embedding table: resident
            pl.BlockSpec((H, A_pad), lambda i: (0, 0)),     # linear weight: resident
            pl.BlockSpec((1, A_pad), lambda i: (0, 0)),     # bias: resident
        ],
        out_specs=pl.BlockSpec((tm, A_pad), lambda i: (i, 0)),
    )

    out_pad = pl.pallas_call(
        emb_ann_kernel,
        out_shape=jax.ShapeDtypeStruct((M_pad, A_pad), jnp.float32),
        grid_spec=grid_spec,
        compiler_params=pltpu.CompilerParams(
            # Independent M tiles -> shard across TensorCores (v7x megacore).
            dimension_semantics=("parallel",)),
    )(idx2, emb_table, w_pad, b_pad)
    return out_pad[:, :a_out]


def emb_ann_forward(indices, params, *, tm=128):
    """indices: (B,) int32 state numbers; params from make_emb_ann_params.

    Note: indices must lie in [0, S); out-of-range rows silently yield
    bias-only output (all-zero one-hot) instead of raising like nn.Embedding.
    """
    emb_table, w_pad, b_pad, A = params
    B = indices.shape[0]
    M_pad = max(tm, ((B + tm - 1) // tm) * tm)
    idx2 = jnp.zeros((M_pad, 1), jnp.int32).at[:B, 0].set(indices.astype(jnp.int32))
    out = _emb_ann_call(idx2, emb_table, w_pad, b_pad, tm, A)
    return out[:B]


if __name__ == "__main__":
    # Module hyper-params (in_features = #states, out_features = #actions)
    in_features, out_features, hidden_size = 16, 4, 32
    B = 256  # many env steps batched per call -> grid=(2,) with tm=128

    key = jax.random.PRNGKey(0)
    k1, k2, k3, k4, k5 = jax.random.split(key, 5)

    # Deterministic synthetic parameters (shapes match nn.Embedding / nn.Linear):
    #   Embedding.weight ~ N(0, 1): (in_features, hidden_size)
    #   Linear.weight    ~ U(-1/sqrt(H), 1/sqrt(H)): stored here as (H, A) = W^T
    #   Linear.bias      ~ U(-1/sqrt(H), 1/sqrt(H)): (A,)
    emb_table = jax.random.normal(k1, (in_features, hidden_size), jnp.float32)
    bound = 1.0 / (hidden_size ** 0.5)
    w = jax.random.uniform(k2, (hidden_size, out_features), jnp.float32, -bound, bound)
    b = jax.random.uniform(k3, (out_features,), jnp.float32, -bound, bound)

    # One-time parameter prep (padding NOT on the per-step path).
    params = make_emb_ann_params(emb_table, w, b)

    def reference(idx):
        x = emb_table[idx]
        x = x * jax.nn.sigmoid(x)
        return x @ w + b

    # Large batched call (grid=(2,), "parallel" M axis).
    indices = jax.random.randint(k4, (B,), 0, in_features, dtype=jnp.int32)
    out = jax.block_until_ready(emb_ann_forward(indices, params))
    assert out.shape == (B, out_features)
    assert jnp.allclose(out, reference(indices), atol=1e-5, rtol=1e-5), "mismatch (B=256)"

    # Small / odd batch exercises the M-padding path (grid=(1,)).
    idx_small = jax.random.randint(k5, (8,), 0, in_features, dtype=jnp.int32)
    out_small = jax.block_until_ready(emb_ann_forward(idx_small, params))
    assert out_small.shape == (8, out_features)
    assert jnp.allclose(out_small, reference(idx_small), atol=1e-5, rtol=1e-5), "mismatch (B=8)"

    print("KERNEL_OK")
</pallas_src>

<mosaic_0001>
module attributes {stable_mosaic.version = 11 : i64} {
  func.func @emb_ann_kernel(%arg0: i32, %arg1: memref<128x1xi32, #tpu.memory_space<vmem>>, %arg2: memref<16x32xf32, #tpu.memory_space<vmem>>, %arg3: memref<32x128xf32, #tpu.memory_space<vmem>>, %arg4: memref<1x128xf32, #tpu.memory_space<vmem>>, %arg5: memref<128x128xf32, #tpu.memory_space<vmem>>) attributes {dimension_semantics = [#tpu.dimension_semantics<parallel>], iteration_bounds = array<i64: 2>, scalar_prefetch = 0 : i64, scratch_operands = 0 : i64, tpu.core_type = #tpu.core_type<tc>, window_params = [{transform_indices = @transform_0, window_bounds = array<i64: 128, 1>}, {pipeline_mode = #tpu.pipeline_mode<synchronous>, transform_indices = @transform_1, window_bounds = array<i64: 16, 32>}, {pipeline_mode = #tpu.pipeline_mode<synchronous>, transform_indices = @transform_2, window_bounds = array<i64: 32, 128>}, {pipeline_mode = #tpu.pipeline_mode<synchronous>, transform_indices = @transform_3, window_bounds = array<i64: 1, 128>}, {transform_indices = @transform_4, window_bounds = array<i64: 128, 128>}]} {
    %c0 = arith.constant 0 : index
    %c0_0 = arith.constant 0 : index
    %0 = vector.load %arg1[%c0, %c0_0] : memref<128x1xi32, #tpu.memory_space<vmem>>, vector<128x1xi32>
    %1 = tpu.iota {dimensions = array<i32: 1>} : vector<128x16xi32>
    %2 = vector.broadcast %0 : vector<128x1xi32> to vector<128x16xi32>
    %3 = arith.cmpi eq, %1, %2 : vector<128x16xi32>
    %4 = arith.extui %3 : vector<128x16xi1> to vector<128x16xi32>
    %5 = arith.sitofp %4 : vector<128x16xi32> to vector<128x16xf32>
    %c0_1 = arith.constant 0 : index
    %c0_2 = arith.constant 0 : index
    %6 = vector.load %arg2[%c0_1, %c0_2] : memref<16x32xf32, #tpu.memory_space<vmem>>, vector<16x32xf32>
    %cst = arith.constant dense<0.000000e+00> : vector<128x32xf32>
    %7 = tpu.matmul %5, %6, %cst {dimension_numbers = #tpu.dot_dimension_numbers<[1], [0], [0], [1], [0, 0, 1, 1], [], []>, precision = #tpu.contract_precision<fp32>} : vector<128x16xf32>, vector<16x32xf32>, vector<128x32xf32> -> vector<128x32xf32>
    %8 = arith.negf %7 : vector<128x32xf32>
    %9 = math.exp %8 : vector<128x32xf32>
    %cst_3 = arith.constant 1.000000e+00 : f32
    %10 = vector.broadcast %cst_3 : f32 to vector<128x32xf32>
    %11 = arith.addf %10, %9 : vector<128x32xf32>
    %12 = arith.divf %10, %11 : vector<128x32xf32>
    %13 = arith.mulf %7, %12 : vector<128x32xf32>
    %c0_4 = arith.constant 0 : index
    %c0_5 = arith.constant 0 : index
    %14 = vector.load %arg3[%c0_4, %c0_5] : memref<32x128xf32, #tpu.memory_space<vmem>>, vector<32x128xf32>
    %cst_6 = arith.constant dense<0.000000e+00> : vector<128x128xf32>
    %15 = tpu.matmul %13, %14, %cst_6 {dimension_numbers = #tpu.dot_dimension_numbers<[1], [0], [0], [1], [0, 0, 1, 1], [], []>, precision = #tpu.contract_precision<fp32>} : vector<128x32xf32>, vector<32x128xf32>, vector<128x128xf32> -> vector<128x128xf32>
    %c0_7 = arith.constant 0 : index
    %c0_8 = arith.constant 0 : index
    %16 = vector.load %arg4[%c0_7, %c0_8] : memref<1x128xf32, #tpu.memory_space<vmem>>, vector<1x128xf32>
    %17 = vector.broadcast %16 : vector<1x128xf32> to vector<128x128xf32>
    %18 = arith.addf %15, %17 : vector<128x128xf32>
    %c0_9 = arith.constant 0 : index
    %c0_10 = arith.constant 0 : index
    %19 = vector.load %arg5[%c0_9, %c0_10] : memref<128x128xf32, #tpu.memory_space<vmem>>, vector<128x128xf32>
    tpu.vector_store %arg5[%c0_9, %c0_10], %18 {strides = array<i32>} : memref<128x128xf32, #tpu.memory_space<vmem>>, vector<128x128xf32>,
    return
  }
  func.func @transform_0(%arg0: i32) -> (i32, i32) {
    %c0_i32 = arith.constant 0 : i32
    %c0_i32_0 = arith.constant 0 : i32
    return %arg0, %c0_i32 : i32, i32
  }
  func.func @transform_1(%arg0: i32) -> (i32, i32) {
    %c0_i32 = arith.constant 0 : i32
    %c0_i32_0 = arith.constant 0 : i32
    %c0_i32_1 = arith.constant 0 : i32
    return %c0_i32, %c0_i32_0 : i32, i32
  }
  func.func @transform_2(%arg0: i32) -> (i32, i32) {
    %c0_i32 = arith.constant 0 : i32
    %c0_i32_0 = arith.constant 0 : i32
    %c0_i32_1 = arith.constant 0 : i32
    return %c0_i32, %c0_i32_0 : i32, i32
  }
  func.func @transform_3(%arg0: i32) -> (i32, i32) {
    %c0_i32 = arith.constant 0 : i32
    %c0_i32_0 = arith.constant 0 : i32
    %c0_i32_1 = arith.constant 0 : i32
    return %c0_i32, %c0_i32_0 : i32, i32
  }
  func.func @transform_4(%arg0: i32) -> (i32, i32) {
    %c0_i32 = arith.constant 0 : i32
    %c0_i32_0 = arith.constant 0 : i32
    return %arg0, %c0_i32 : i32, i32
  }
}

</mosaic_0001>

<llo_original>
// kernel: _emb_ann_call.1
$region0: #{_emb_ann_call.1}
  #allocation0 [shape = 'u32[]', space=smem, size = 0x4, offset = 0x4, fixed_abs, tag = 'smem constant byte address 0x4 - core index']
  #allocation1 [shape = 'u32[144,128]{1,0:T(1,128)}', space=vmem, size = 0x12000, scoped, tag = 'internal scratch']
  %s0 = inlined_call_operand.vmem [shape: s32[256,1], index: 0, kind: input, shape index: {}]
  %s1 = inlined_call_operand.vmem [shape: f32[16,32], index: 1, kind: input, shape index: {}]
  %s2 = inlined_call_operand.vmem [shape: f32[32,128], index: 2, kind: input, shape index: {}]
  %s3 = inlined_call_operand.vmem [shape: f32[1,128], index: 3, kind: input, shape index: {}]
  %s4 = inlined_call_operand.vmem [shape: f32[256,128], index: 4, kind: output, shape index: {}]
  %s5 = sld [smem:[#allocation0]]
  $region49: #{_emb_ann_call.1} parent=0
    _
  %s7 = ssub.s32 1, %s5
  %s8 = scalar_select 0, %s7, %s5
  loop: start=0, step=1, limit=4
  $region2: #{_emb_ann_call.1} parent=0 // loop_pre_header
    _
  $region3: #{_emb_ann_call.1} parent=0 // loop_header
    %s10 = sphi 0, %s14
    %p11 = scmp.ge.s32.totalorder %s10, 4
    %s20 = sphi 0, %s22
    %s23 = sphi 0, %s20
    %s24 = sphi 0, %s23
    %s40 = sphi 0, %s24
    %s44 = sphi 0, %s44
    %s46 = sphi 0, %s44
    %s47 = sphi 0, %s46
    %s61 = sphi 0, %s47
    %s65 = sphi 0, %s65
    %s67 = sphi 0, %s65
    %s68 = sphi 0, %s67
    %s82 = sphi 0, %s68
    %s86 = sphi 0, %s86
    %s88 = sphi 0, %s86
    %s89 = sphi 0, %s88
    %s103 = sphi 0, %s89
    %s109 = sphi 0, %s111
    %s112 = sphi 0, %s109
    %s113 = sphi 0, %s112
    %s129 = sphi 0, %s113
  $region4: #{_emb_ann_call.1} parent=0 // loop_header_branch
    %13 = sbr.rel (%p11) target = $region8
  $region5: #{_emb_ann_call.1} parent=0 // loop_body
    %s15 = ssub.s32 %s10, 1
    %s16 = ssub.s32 %s10, 2
    %s17 = sadd.s32 %s10, 1
    %s18 = ssub.s32 %s10, %s17
    %p19 = scmp.eq.s32.totalorder %s18, 0
    %s21 = sadd.s32 %s20, 1
    %s22 = scalar_select %p19, %s20, %s21
    %p25 = pneg %p19
    %p26 = scmp.eq.s32.totalorder %s10, 1
    %p27 = por %p25, %p26
    %p28 = scmp.ne.s32.totalorder %s20, %s23
    %p29 = scmp.eq.s32.totalorder %s10, 0
    %p30 = por %p28, %p29
    %p31 = scmp.ne.s32.totalorder %s20, %s23
    %p32 = scmp.eq.s32.totalorder %s15, 1
    %p33 = por %p31, %p32
    %p34 = scmp.ne.s32.totalorder %s23, %s24
    %p35 = scmp.eq.s32.totalorder %s15, 0
    %p36 = por %p34, %p35
    %p37 = scmp.ne.s32.totalorder %s23, %s24
    %p38 = scmp.eq.s32.totalorder %s16, 1
    %p39 = por %p37, %p38
    %p41 = scmp.ne.s32.totalorder %s24, %s40
    %p42 = scmp.eq.s32.totalorder %s16, 0
    %p43 = por %p41, %p42
    %s45 = sadd.s32 %s44, 1
    %p48 = scmp.eq.s32.totalorder %s10, 1
    %p49 = scmp.ne.s32.totalorder %s44, %s46
    %p50 = scmp.eq.s32.totalorder %s10, 0
    %p51 = por %p49, %p50
    %p52 = scmp.ne.s32.totalorder %s44, %s46
    %p53 = scmp.eq.s32.totalorder %s15, 1
    %p54 = por %p52, %p53
    %p55 = scmp.ne.s32.totalorder %s46, %s47
    %p56 = scmp.eq.s32.totalorder %s15, 0
    %p57 = por %p55, %p56
    %p58 = scmp.ne.s32.totalorder %s46, %s47
    %p59 = scmp.eq.s32.totalorder %s16, 1
    %p60 = por %p58, %p59
    %p62 = scmp.ne.s32.totalorder %s47, %s61
    %p63 = scmp.eq.s32.totalorder %s16, 0
    %p64 = por %p62, %p63
    %s66 = sadd.s32 %s65, 1
    %p69 = scmp.eq.s32.totalorder %s10, 1
    %p70 = scmp.ne.s32.totalorder %s65, %s67
    %p71 = scmp.eq.s32.totalorder %s10, 0
    %p72 = por %p70, %p71
    %p73 = scmp.ne.s32.totalorder %s65, %s67
    %p74 = scmp.eq.s32.totalorder %s15, 1
    %p75 = por %p73, %p74
    %p76 = scmp.ne.s32.totalorder %s67, %s68
    %p77 = scmp.eq.s32.totalorder %s15, 0
    %p78 = por %p76, %p77
    %p79 = scmp.ne.s32.totalorder %s67, %s68
    %p80 = scmp.eq.s32.totalorder %s16, 1
    %p81 = por %p79, %p80
    %p83 = scmp.ne.s32.totalorder %s68, %s82
    %p84 = scmp.eq.s32.totalorder %s16, 0
    %p85 = por %p83, %p84
    %s87 = sadd.s32 %s86, 1
    %p90 = scmp.eq.s32.totalorder %s10, 1
    %p91 = scmp.ne.s32.totalorder %s86, %s88
    %p92 = scmp.eq.s32.totalorder %s10, 0
    %p93 = por %p91, %p92
    %p94 = scmp.ne.s32.totalorder %s86, %s88
    %p95 = scmp.eq.s32.totalorder %s15, 1
    %p96 = por %p94, %p95
    %p97 = scmp.ne.s32.totalorder %s88, %s89
    %p98 = scmp.eq.s32.totalorder %s15, 0
    %p99 = por %p97, %p98
    %p100 = scmp.ne.s32.totalorder %s88, %s89
    %p101 = scmp.eq.s32.totalorder %s16, 1
    %p102 = por %p100, %p101
    %p104 = scmp.ne.s32.totalorder %s89, %s103
    %p105 = scmp.eq.s32.totalorder %s16, 0
    %p106 = por %p104, %p105
    %s107 = ssub.s32 %s10, %s17
    %p108 = scmp.eq.s32.totalorder %s107, 0
    %s110 = sadd.s32 %s109, 1
    %s111 = scalar_select %p108, %s109, %s110
    %p114 = pneg %p108
    %p115 = scmp.eq.s32.totalorder %s10, 1
    %p116 = por %p114, %p115
    %p117 = scmp.ne.s32.totalorder %s109, %s112
    %p118 = scmp.eq.s32.totalorder %s10, 0
    %p119 = por %p117, %p118
    %p120 = scmp.ne.s32.totalorder %s109, %s112
    %p121 = scmp.eq.s32.totalorder %s15, 1
    %p122 = por %p120, %p121
    %p123 = scmp.ne.s32.totalorder %s112, %s113
    %p124 = scmp.eq.s32.totalorder %s15, 0
    %p125 = por %p123, %p124
    %p126 = scmp.ne.s32.totalorder %s112, %s113
    %p127 = scmp.eq.s32.totalorder %s16, 1
    %p128 = por %p126, %p127
    %p130 = scmp.ne.s32.totalorder %s113, %s129
    %p131 = scmp.eq.s32.totalorder %s16, 0
    %p132 = por %p130, %p131
    %p133 = scmp.le.s32.totalorder 1, %s10
    %p134 = scmp.lt.s32.totalorder %s10, 3
    %p135 = pnand %p133, %p134
    %p136 = pneg %p135
    // Predicated region
    $region9: #{_emb_ann_call.1} parent=5 // pred_check
      _
    $region10: #{_emb_ann_call.1} parent=5 // pred_check_branch
      %138 = sbr.rel (%p135) target = $region12
    $region11: #{_emb_ann_call.1} parent=5 // pred_region
      %s139 = ssub.s32 %s10, 1
      // Predicated region
      $region13: #{_emb_ann_call.1} parent=11 // pred_check
        %p140 = pneg %p57
      $region14: #{_emb_ann_call.1} parent=11 // pred_check_branch
        %142 = sbr.rel (%p140) target = $region16
      $region15: #{_emb_ann_call.1} parent=11 // pred_region
        _
      $region16: #{_emb_ann_call.1} parent=11 // pred_fallthru
        _
      // Predicated region
      $region17: #{_emb_ann_call.1} parent=11 // pred_check
        %p143 = pneg %p78
      $region18: #{_emb_ann_call.1} parent=11 // pred_check_branch
        %145 = sbr.rel (%p143) target = $region20
      $region19: #{_emb_ann_call.1} parent=11 // pred_region
        _
      $region20: #{_emb_ann_call.1} parent=11 // pred_fallthru
        _
      // Predicated region
      $region21: #{_emb_ann_call.1} parent=11 // pred_check
        %p146 = pneg %p99
      $region22: #{_emb_ann_call.1} parent=11 // pred_check_branch
        %148 = sbr.rel (%p146) target = $region24
      $region23: #{_emb_ann_call.1} parent=11 // pred_region
        _
      $region24: #{_emb_ann_call.1} parent=11 // pred_fallthru
        _
    $region12: #{_emb_ann_call.1} parent=5 // pred_fallthru
      _
    %p149 = scmp.lt.s32.totalorder %s10, 2
    // Predicated region
    $region25: #{_emb_ann_call.1} parent=5 // pred_check
      %p150 = pneg %p149
    $region26: #{_emb_ann_call.1} parent=5 // pred_check_branch
      %152 = sbr.rel (%p150) target = $region28
    $region27: #{_emb_ann_call.1} parent=5 // pred_region
      // Predicated region
      $region29: #{_emb_ann_call.1} parent=27 // pred_check
        %p153 = pneg %p30
      $region30: #{_emb_ann_call.1} parent=27 // pred_check_branch
        %155 = sbr.rel (%p153) target = $region32
      $region31: #{_emb_ann_call.1} parent=27 // pred_region
        %s156 = smul.u32 16, %s10
        %p157 = scmp.lt.s32.totalorder %s156, 31
        %s158 = scalar_select %p157, %s156, 31
        %s159 = smul.addr %s158, 8
        %s160 = scalar_lea.vmem %s0, %s159
        %s161 = smul.u32 16, %s10
      $region32: #{_emb_ann_call.1} parent=27 // pred_fallthru
        _
    $region28: #{_emb_ann_call.1} parent=5 // pred_fallthru
      _
    %p162 = scmp.le.s32.totalorder 1, %s10
    %p163 = scmp.lt.s32.totalorder %s10, 3
    %p164 = pnand %p162, %p163
    %p165 = pneg %p164
    // Predicated region
    $region33: #{_emb_ann_call.1} parent=5 // pred_check
      _
    $region34: #{_emb_ann_call.1} parent=5 // pred_check_branch
      %167 = sbr.rel (%p164) target = $region36
    $region35: #{_emb_ann_call.1} parent=5 // pred_region
      %s168 = ssub.s32 %s10, 1
      %s169 = smul.u32 16, %s15
      %p170 = scmp.lt.s32.totalorder %s169, 31
      %s171 = scalar_select %p170, %s169, 31
      %s172 = smul.addr %s171, 8
      %s173 = scalar_lea.vmem %s0, %s172
      %p174 = pneg %p36
      %p175 = pneg %p33
      %p176 = pneg %p57
      %p177 = pneg %p54
      %p178 = pneg %p78
      %p179 = pneg %p75
      %p180 = pneg %p99
      %p181 = pneg %p96
      %p182 = pneg %p125
      %p183 = pneg %p122
      %s184 = smul.u32 16, %s15
      %p185 = scmp.lt.s32.totalorder %s184, 31
      %s186 = scalar_select %p185, %s184, 31
      %s187 = smul.addr %s186, 8
      %s188 = scalar_lea.vmem %s4, %s187
      %s189 = smul.u32 16, %s15
      %p190 = scmp.lt.s32.totalorder %s189, 31
      %s191 = scalar_select %p190, %s189, 31
      %s192 = smul.addr %s191, 8
      %s193 = scalar_lea.vmem %s0, %s192
      %s194 = smul.u32 16, %s15
      %s195 = smul.u32 16, %s15
      %p196 = scmp.lt.s32.totalorder %s195, 31
      %s197 = scalar_select %p196, %s195, 31
      %s198 = smul.addr %s197, 8
      %s199 = scalar_lea.vmem %s4, %s198
      %s200 = smul.u32 16, %s15
      %v201 = vld [vmem:[%s193] sm:$0xff]
      %v202 = vld [vmem:[%s193 + $0x8] sm:$0xff]
      %v203 = vld [vmem:[%s193 + $0x10] sm:$0xff]
      %v204 = vld [vmem:[%s193 + $0x18] sm:$0xff]
      %v205 = vld [vmem:[%s193 + $0x20] sm:$0xff]
      %v206 = vld [vmem:[%s193 + $0x28] sm:$0xff]
      %v207 = vld [vmem:[%s193 + $0x30] sm:$0xff]
      %v208 = vld [vmem:[%s193 + $0x38] sm:$0xff]
      %v209 = vld [vmem:[%s193 + $0x40] sm:$0xff]
      %v210 = vld [vmem:[%s193 + $0x48] sm:$0xff]
      %v211 = vld [vmem:[%s193 + $0x50] sm:$0xff]
      %v212 = vld [vmem:[%s193 + $0x58] sm:$0xff]
      %v213 = vld [vmem:[%s193 + $0x60] sm:$0xff]
      %v214 = vld [vmem:[%s193 + $0x68] sm:$0xff]
      %v215 = vld [vmem:[%s193 + $0x70] sm:$0xff]
      %v216 = vld [vmem:[%s193 + $0x78] sm:$0xff]
      %v217 = vlaneseq
      %v218 = vand.u32 %v217, 127
      %219 = vset.pattern.permute.xlu0 0
      %220 = vperm.xlu0 %219, %v201
      %v221 = vpop.permute.xlu0 %220
      %222 = vset.pattern.permute.xlu0 0
      %223 = vperm.xlu0 %222, %v202
      %v224 = vpop.permute.xlu0 %223
      %225 = vset.pattern.permute.xlu0 0
      %226 = vperm.xlu0 %225, %v203
      %v227 = vpop.permute.xlu0 %226
      %228 = vset.pattern.permute.xlu0 0
      %229 = vperm.xlu0 %228, %v204
      %v230 = vpop.permute.xlu0 %229
      %231 = vset.pattern.permute.xlu0 0
      %232 = vperm.xlu0 %231, %v205
      %v233 = vpop.permute.xlu0 %232
      %234 = vset.pattern.permute.xlu0 0
      %235 = vperm.xlu0 %234, %v206
      %v236 = vpop.permute.xlu0 %235
      %237 = vset.pattern.permute.xlu0 0
      %238 = vperm.xlu0 %237, %v207
      %v239 = vpop.permute.xlu0 %238
      %240 = vset.pattern.permute.xlu0 0
      %241 = vperm.xlu0 %240, %v208
      %v242 = vpop.permute.xlu0 %241
      %243 = vset.pattern.permute.xlu0 0
      %244 = vperm.xlu0 %243, %v209
      %v245 = vpop.permute.xlu0 %244
      %246 = vset.pattern.permute.xlu0 0
      %247 = vperm.xlu0 %246, %v210
      %v248 = vpop.permute.xlu0 %247
      %249 = vset.pattern.permute.xlu0 0
      %250 = vperm.xlu0 %249, %v211
      %v251 = vpop.permute.xlu0 %250
      %252 = vset.pattern.permute.xlu0 0
      %253 = vperm.xlu0 %252, %v212
      %v254 = vpop.permute.xlu0 %253
      %255 = vset.pattern.permute.xlu0 0
      %256 = vperm.xlu0 %255, %v213
      %v257 = vpop.permute.xlu0 %256
      %258 = vset.pattern.permute.xlu0 0
      %259 = vperm.xlu0 %258, %v214
      %v260 = vpop.permute.xlu0 %259
      %261 = vset.pattern.permute.xlu0 0
      %262 = vperm.xlu0 %261, %v215
      %v263 = vpop.permute.xlu0 %262
      %264 = vset.pattern.permute.xlu0 0
      %265 = vperm.xlu0 %264, %v216
      %v266 = vpop.permute.xlu0 %265
      %vm267 = vcmp.eq.s32.totalorder %v218, %v221
      %vm268 = vcmp.eq.s32.totalorder %v218, %v224
      %vm269 = vcmp.eq.s32.totalorder %v218, %v227
      %vm270 = vcmp.eq.s32.totalorder %v218, %v230
      %vm271 = vcmp.eq.s32.totalorder %v218, %v233
      %vm272 = vcmp.eq.s32.totalorder %v218, %v236
      %vm273 = vcmp.eq.s32.totalorder %v218, %v239
      %vm274 = vcmp.eq.s32.totalorder %v218, %v242
      %vm275 = vcmp.eq.s32.totalorder %v218, %v245
      %vm276 = vcmp.eq.s32.totalorder %v218, %v248
      %vm277 = vcmp.eq.s32.totalorder %v218, %v251
      %vm278 = vcmp.eq.s32.totalorder %v218, %v254
      %vm279 = vcmp.eq.s32.totalorder %v218, %v257
      %vm280 = vcmp.eq.s32.totalorder %v218, %v260
      %vm281 = vcmp.eq.s32.totalorder %v218, %v263
      %vm282 = vcmp.eq.s32.totalorder %v218, %v266
      %v283 = vsel %vm267, 1, 0
      %v284 = vsel %vm268, 1, 0
      %v285 = vsel %vm269, 1, 0
      %v286 = vsel %vm270, 1, 0
      %v287 = vsel %vm271, 1, 0
      %v288 = vsel %vm272, 1, 0
      %v289 = vsel %vm273, 1, 0
      %v290 = vsel %vm274, 1, 0
      %v291 = vsel %vm275, 1, 0
      %v292 = vsel %vm276, 1, 0
      %v293 = vsel %vm277, 1, 0
      %v294 = vsel %vm278, 1, 0
      %v295 = vsel %vm279, 1, 0
      %v296 = vsel %vm280, 1, 0
      %v297 = vsel %vm281, 1, 0
      %v298 = vsel %vm282, 1, 0
      %v299 = vcvt.s32.f32 %v283
      %v300 = vcvt.s32.f32 %v284
      %v301 = vcvt.s32.f32 %v285
      %v302 = vcvt.s32.f32 %v286
      %v303 = vcvt.s32.f32 %v287
      %v304 = vcvt.s32.f32 %v288
      %v305 = vcvt.s32.f32 %v289
      %v306 = vcvt.s32.f32 %v290
      %v307 = vcvt.s32.f32 %v291
      %v308 = vcvt.s32.f32 %v292
      %v309 = vcvt.s32.f32 %v293
      %v310 = vcvt.s32.f32 %v294
      %v311 = vcvt.s32.f32 %v295
      %v312 = vcvt.s32.f32 %v296
      %v313 = vcvt.s32.f32 %v297
      %v314 = vcvt.s32.f32 %v298
      %v315 = vld [vmem:[%s1] sm:$0xff]
      %v316 = vld [vmem:[%s1 + $0x8] sm:$0xff]
      %vm317 = vcmask 130048
      %v319 = vsel %vm317, %v299, 0
      %v322 = vsel %vm317, %v300, 0
      %v325 = vsel %vm317, %v301, 0
      %v328 = vsel %vm317, %v302, 0
      %v331 = vsel %vm317, %v303, 0
      %v334 = vsel %vm317, %v304, 0
      %v337 = vsel %vm317, %v305, 0
      %v340 = vsel %vm317, %v306, 0
      %v343 = vsel %vm317, %v307, 0
      %v346 = vsel %vm317, %v308, 0
      %v349 = vsel %vm317, %v309, 0
      %v352 = vsel %vm317, %v310, 0
      %v355 = vsel %vm317, %v311, 0
      %v358 = vsel %vm317, %v312, 0
      %v361 = vsel %vm317, %v313, 0
      %v364 = vsel %vm317, %v314, 0
      %366 = vmatprep.subr.mxu0 0.0
      %v367 = vand.u32 %v315, 4294901760
      %368 = vmatpush1.msra.mxu0 %v367
      %369 = vmatprep.subr.mxu0 0.0
      %v370 = vand.u32 %v316, 4294901760
      %371 = vmatpush1.msra.mxu0 %v370
      %372 = vmatprep.subr.mxu0 0.0
      %373 = vmatpush1.msra.mxu0 0.0
      %374 = vmatprep.subr.mxu0 0.0
      %375 = vmatpush1.msra.mxu0 0.0
      %376 = vmatprep.subr.mxu0 0.0
      %377 = vmatpush1.msra.mxu0 0.0
      %378 = vmatprep.subr.mxu0 0.0
      %379 = vmatpush1.msra.mxu0 0.0
      %380 = vmatprep.subr.mxu0 0.0
      %381 = vmatpush1.msra.mxu0 0.0
      %382 = vmatprep.subr.mxu0 0.0
      %383 = vmatpush1.msra.mxu0 0.0
      %384 = vmatprep.subr.mxu0 0.0
      %385 = vmatpush1.msra.mxu0 0.0
      %386 = vmatprep.subr.mxu0 0.0
      %387 = vmatpush1.msra.mxu0 0.0
      %388 = vmatprep.subr.mxu0 0.0
      %389 = vmatpush1.msra.mxu0 0.0
      %390 = vmatprep.subr.mxu0 0.0
      %391 = vmatpush1.msra.mxu0 0.0
      %392 = vmatprep.subr.mxu0 0.0
      %393 = vmatpush1.msra.mxu0 0.0
      %394 = vmatprep.subr.mxu0 0.0
      %395 = vmatpush1.msra.mxu0 0.0
      %396 = vmatprep.subr.mxu0 0.0
      %397 = vmatpush1.msra.mxu0 0.0
      %398 = vmatprep.subr.mxu0 0.0
      %399 = vmatpush1.msra.mxu0 0.0
      %400 = vmatprep.subr.mxu0 0.0
      %401 = vmatpush1.msra.mxu0 0.0
      %402 = vmatprep.subr.mxu0 0.0
      %403 = vmatpush1.msra.mxu0 0.0
      %404 = vmatprep.subr.mxu0 0.0
      %405 = vmatpush1.msra.mxu0 0.0
      %406 = vmatprep.subr.mxu0 0.0
      %407 = vmatpush1.msra.mxu0 0.0
      %408 = vmatprep.subr.mxu0 0.0
      %409 = vmatpush1.msra.mxu0 0.0
      %410 = vmatprep.subr.mxu0 0.0
      %411 = vmatpush1.msra.mxu0 0.0
      %412 = vmatprep.subr.mxu0 0.0
      %413 = vmatpush1.msra.mxu0 0.0
      %414 = vmatprep.subr.mxu0 0.0
      %415 = vmatpush1.msra.mxu0 0.0
      %416 = vmatprep.subr.mxu0 0.0
      %417 = vmatpush1.msra.mxu0 0.0
      %418 = vmatprep.subr.mxu0 0.0
      %419 = vmatpush1.msra.mxu0 0.0
      %420 = vmatprep.subr.mxu0 0.0
      %421 = vmatpush1.msra.mxu0 0.0
      %422 = vmatprep.subr.mxu0 0.0
      %423 = vmatpush1.msra.mxu0 0.0
      %424 = vmatprep.subr.mxu0 0.0
      %425 = vmatpush1.msra.mxu0 0.0
      %426 = vmatprep.subr.mxu0 0.0
      %427 = vmatpush1.msra.mxu0 0.0
      %428 = vmatprep.subr.mxu0 0.0
      %429 = vmatpush1.msra.mxu0 0.0
      %430 = vmatprep.subr.mxu0 0.0
      %431 = vmatpush1.msra.mxu0 0.0
      %432 = vmatprep.mubr.f32.mxu0 0.0
      %v433 = vand.u32 %v319, 4294901760
      %v434 = vsub.f32 %v319, %v433
      %v435 = vand.u32 %v434, 4294901760
      %v436 = vsub.f32 %v434, %v435
      %v437 = vand.u32 %v436, 4294901760
      %438 = vmatmul.mubr.f32.gmra.mrb[0].mxu0 %v437
      %v439 = vpop.f32.mrb[0].mxu0
      %v440 = vadd.f32 0.0, %v439
      %v441 = vpop.f32.mrb[0].mxu0
      %442 = vmatprep.mubr.f32.mxu0 0.0
      %v443 = vand.u32 %v322, 4294901760
      %v444 = vsub.f32 %v322, %v443
      %v445 = vand.u32 %v444, 4294901760
      %v446 = vsub.f32 %v444, %v445
      %v447 = vand.u32 %v446, 4294901760
      %448 = vmatmul.mubr.f32.gmra.mrb[0].mxu0 %v447
      %v449 = vpop.f32.mrb[0].mxu0
      %v450 = vadd.f32 0.0, %v449
      %v451 = vpop.f32.mrb[0].mxu0
      %452 = vmatprep.mubr.f32.mxu0 0.0
      %v453 = vand.u32 %v325, 4294901760
      %v454 = vsub.f32 %v325, %v453
      %v455 = vand.u32 %v454, 4294901760
      %v456 = vsub.f32 %v454, %v455
      %v457 = vand.u32 %v456, 4294901760
      %458 = vmatmul.mubr.f32.gmra.mrb[0].mxu0 %v457
      %v459 = vpop.f32.mrb[0].mxu0
      %v460 = vadd.f32 0.0, %v459
      %v461 = vpop.f32.mrb[0].mxu0
      %462 = vmatprep.mubr.f32.mxu0 0.0
      %v463 = vand.u32 %v328, 4294901760
      %v464 = vsub.f32 %v328, %v463
      %v465 = vand.u32 %v464, 4294901760
      %v466 = vsub.f32 %v464, %v465
      %v467 = vand.u32 %v466, 4294901760
      %468 = vmatmul.mubr.f32.gmra.mrb[0].mxu0 %v467
      %v469 = vpop.f32.mrb[0].mxu0
      %v470 = vadd.f32 0.0, %v469
      %v471 = vpop.f32.mrb[0].mxu0
      %472 = vmatprep.mubr.f32.mxu0 0.0
      %v473 = vand.u32 %v331, 4294901760
      %v474 = vsub.f32 %v331, %v473
      %v475 = vand.u32 %v474, 4294901760
      %v476 = vsub.f32 %v474, %v475
      %v477 = vand.u32 %v476, 4294901760
      %478 = vmatmul.mubr.f32.gmra.mrb[0].mxu0 %v477
      %v479 = vpop.f32.mrb[0].mxu0
      %v480 = vadd.f32 0.0, %v479
      %v481 = vpop.f32.mrb[0].mxu0
      %482 = vmatprep.mubr.f32.mxu0 0.0
      %v483 = vand.u32 %v334, 4294901760
      %v484 = vsub.f32 %v334, %v483
      %v485 = vand.u32 %v484, 4294901760
      %v486 = vsub.f32 %v484, %v485
      %v487 = vand.u32 %v486, 4294901760
      %488 = vmatmul.mubr.f32.gmra.mrb[0].mxu0 %v487
      %v489 = vpop.f32.mrb[0].mxu0
      %v490 = vadd.f32 0.0, %v489
      %v491 = vpop.f32.mrb[0].mxu0
      %492 = vmatprep.mubr.f32.mxu0 0.0
      %v493 = vand.u32 %v337, 4294901760
      %v494 = vsub.f32 %v337, %v493
      %v495 = vand.u32 %v494, 4294901760
      %v496 = vsub.f32 %v494, %v495
      %v497 = vand.u32 %v496, 4294901760
      %498 = vmatmul.mubr.f32.gmra.mrb[0].mxu0 %v497
      %v499 = vpop.f32.mrb[0].mxu0
      %v500 = vadd.f32 0.0, %v499
      %v501 = vpop.f32.mrb[0].mxu0
      %502 = vmatprep.mubr.f32.mxu0 0.0
      %v503 = vand.u32 %v340, 4294901760
      %v504 = vsub.f32 %v340, %v503
      %v505 = vand.u32 %v504, 4294901760
      %v506 = vsub.f32 %v504, %v505
      %v507 = vand.u32 %v506, 4294901760
      %508 = vmatmul.mubr.f32.gmra.mrb[0].mxu0 %v507
      %v509 = vpop.f32.mrb[0].mxu0
      %v510 = vadd.f32 0.0, %v509
      %v511 = vpop.f32.mrb[0].mxu0
      %512 = vmatprep.mubr.f32.mxu0 0.0
      %v513 = vand.u32 %v343, 4294901760
      %v514 = vsub.f32 %v343, %v513
      %v515 = vand.u32 %v514, 4294901760
      %v516 = vsub.f32 %v514, %v515
      %v517 = vand.u32 %v516, 4294901760
      %518 = vmatmul.mubr.f32.gmra.mrb[0].mxu0 %v517
      %v519 = vpop.f32.mrb[0].mxu0
      %v520 = vadd.f32 0.0, %v519
      %v521 = vpop.f32.mrb[0].mxu0
      %522 = vmatprep.mubr.f32.mxu0 0.0
      %v523 = vand.u32 %v346, 4294901760
      %v524 = vsub.f32 %v346, %v523
      %v525 = vand.u32 %v524, 4294901760
      %v526 = vsub.f32 %v524, %v525
      %v527 = vand.u32 %v526, 4294901760
      %528 = vmatmul.mubr.f32.gmra.mrb[0].mxu0 %v527
      %v529 = vpop.f32.mrb[0].mxu0
      %v530 = vadd.f32 0.0, %v529
      %v531 = vpop.f32.mrb[0].mxu0
      %532 = vmatprep.mubr.f32.mxu0 0.0
      %v533 = vand.u32 %v349, 4294901760
      %v534 = vsub.f32 %v349, %v533
      %v535 = vand.u32 %v534, 4294901760
      %v536 = vsub.f32 %v534, %v535
      %v537 = vand.u32 %v536, 4294901760
      %538 = vmatmul.mubr.f32.gmra.mrb[0].mxu0 %v537
      %v539 = vpop.f32.mrb[0].mxu0
      %v540 = vadd.f32 0.0, %v539
      %v541 = vpop.f32.mrb[0].mxu0
      %542 = vmatprep.mubr.f32.mxu0 0.0
      %v543 = vand.u32 %v352, 4294901760
      %v544 = vsub.f32 %v352, %v543
      %v545 = vand.u32 %v544, 4294901760
      %v546 = vsub.f32 %v544, %v545
      %v547 = vand.u32 %v546, 4294901760
      %548 = vmatmul.mubr.f32.gmra.mrb[0].mxu0 %v547
      %v549 = vpop.f32.mrb[0].mxu0
      %v550 = vadd.f32 0.0, %v549
      %v551 = vpop.f32.mrb[0].mxu0
      %552 = vmatprep.mubr.f32.mxu0 0.0
      %v553 = vand.u32 %v355, 4294901760
      %v554 = vsub.f32 %v355, %v553
      %v555 = vand.u32 %v554, 4294901760
      %v556 = vsub.f32 %v554, %v555
      %v557 = vand.u32 %v556, 4294901760
      %558 = vmatmul.mubr.f32.gmra.mrb[0].mxu0 %v557
      %v559 = vpop.f32.mrb[0].mxu0
      %v560 = vadd.f32 0.0, %v559
      %v561 = vpop.f32.mrb[0].mxu0
      %562 = vmatprep.mubr.f32.mxu0 0.0
      %v563 = vand.u32 %v358, 4294901760
      %v564 = vsub.f32 %v358, %v563
      %v565 = vand.u32 %v564, 4294901760
      %v566 = vsub.f32 %v564, %v565
      %v567 = vand.u32 %v566, 4294901760
      %568 = vmatmul.mubr.f32.gmra.mrb[0].mxu0 %v567
      %v569 = vpop.f32.mrb[0].mxu0
      %v570 = vadd.f32 0.0, %v569
      %v571 = vpop.f32.mrb[0].mxu0
      %572 = vmatprep.mubr.f32.mxu0 0.0
      %v573 = vand.u32 %v361, 4294901760
      %v574 = vsub.f32 %v361, %v573
      %v575 = vand.u32 %v574, 4294901760
      %v576 = vsub.f32 %v574, %v575
      %v577 = vand.u32 %v576, 4294901760
      %578 = vmatmul.mubr.f32.gmra.mrb[0].mxu0 %v577
      %v579 = vpop.f32.mrb[0].mxu0
      %v580 = vadd.f32 0.0, %v579
      %v581 = vpop.f32.mrb[0].mxu0
      %582 = vmatprep.mubr.f32.mxu0 0.0
      %v583 = vand.u32 %v364, 4294901760
      %v584 = vsub.f32 %v364, %v583
      %v585 = vand.u32 %v584, 4294901760
      %v586 = vsub.f32 %v584, %v585
      %v587 = vand.u32 %v586, 4294901760
      %588 = vmatmul.mubr.f32.gmra.mrb[0].mxu0 %v587
      %v589 = vpop.f32.mrb[0].mxu0
      %v590 = vadd.f32 0.0, %v589
      %v591 = vpop.f32.mrb[0].mxu0
      %592 = vdwg.mxu0
      %593 = vmatprep.subr.mxu0 0.0
      %v594 = vand.u32 %v315, 4294901760
      %v595 = vsub.f32 %v315, %v594
      %v596 = vand.u32 %v595, 4294901760
      %v597 = vsub.f32 %v595, %v596
      %v598 = vand.u32 %v597, 4294901760
      %599 = vmatpush1.msra.mxu0 %v598
      %600 = vmatprep.subr.mxu0 0.0
      %v601 = vand.u32 %v316, 4294901760
      %v602 = vsub.f32 %v316, %v601
      %v603 = vand.u32 %v602, 4294901760
      %v604 = vsub.f32 %v602, %v603
      %v605 = vand.u32 %v604, 4294901760
      %606 = vmatpush1.msra.mxu0 %v605
      %607 = vmatprep.subr.mxu0 0.0
      %608 = vmatpush1.msra.mxu0 0.0
      %609 = vmatprep.subr.mxu0 0.0
      %610 = vmatpush1.msra.mxu0 0.0
      %611 = vmatprep.subr.mxu0 0.0
      %612 = vmatpush1.msra.mxu0 0.0
      %613 = vmatprep.subr.mxu0 0.0
      %614 = vmatpush1.msra.mxu0 0.0
      %615 = vmatprep.subr.mxu0 0.0
      %616 = vmatpush1.msra.mxu0 0.0
      %617 = vmatprep.subr.mxu0 0.0
      %618 = vmatpush1.msra.mxu0 0.0
      %619 = vmatprep.subr.mxu0 0.0
      %620 = vmatpush1.msra.mxu0 0.0
      %621 = vmatprep.subr.mxu0 0.0
      %622 = vmatpush1.msra.mxu0 0.0
      %623 = vmatprep.subr.mxu0 0.0
      %624 = vmatpush1.msra.mxu0 0.0
      %625 = vmatprep.subr.mxu0 0.0
      %626 = vmatpush1.msra.mxu0 0.0
      %627 = vmatprep.subr.mxu0 0.0
      %628 = vmatpush1.msra.mxu0 0.0
      %629 = vmatprep.subr.mxu0 0.0
      %630 = vmatpush1.msra.mxu0 0.0
      %631 = vmatprep.subr.mxu0 0.0
      %632 = vmatpush1.msra.mxu0 0.0
      %633 = vmatprep.subr.mxu0 0.0
      %634 = vmatpush1.msra.mxu0 0.0
      %635 = vmatprep.subr.mxu0 0.0
      %636 = vmatpush1.msra.mxu0 0.0
      %637 = vmatprep.subr.mxu0 0.0
      %638 = vmatpush1.msra.mxu0 0.0
      %639 = vmatprep.subr.mxu0 0.0
      %640 = vmatpush1.msra.mxu0 0.0
      %641 = vmatprep.subr.mxu0 0.0
      %642 = vmatpush1.msra.mxu0 0.0
      %643 = vmatprep.subr.mxu0 0.0
      %644 = vmatpush1.msra.mxu0 0.0
      %645 = vmatprep.subr.mxu0 0.0
      %646 = vmatpush1.msra.mxu0 0.0
      %647 = vmatprep.subr.mxu0 0.0
      %648 = vmatpush1.msra.mxu0 0.0
      %649 = vmatprep.subr.mxu0 0.0
      %650 = vmatpush1.msra.mxu0 0.0
      %651 = vmatprep.subr.mxu0 0.0
      %652 = vmatpush1.msra.mxu0 0.0
      %653 = vmatprep.subr.mxu0 0.0
      %654 = vmatpush1.msra.mxu0 0.0
      %655 = vmatprep.subr.mxu0 0.0
      %656 = vmatpush1.msra.mxu0 0.0
      %657 = vmatprep.subr.mxu0 0.0
      %658 = vmatpush1.msra.mxu0 0.0
      %659 = vmatprep.subr.mxu0 0.0
      %660 = vmatpush1.msra.mxu0 0.0
      %661 = vmatprep.subr.mxu0 0.0
      %662 = vmatpush1.msra.mxu0 0.0
      %663 = vmatprep.subr.mxu0 0.0
      %664 = vmatpush1.msra.mxu0 0.0
      %665 = vmatprep.subr.mxu0 0.0
      %666 = vmatpush1.msra.mxu0 0.0
      %667 = vmatprep.mubr.f32.mxu0 0.0
      %v668 = vand.u32 %v319, 4294901760
      %669 = vmatmul.mubr.f32.gmra.mrb[0].mxu0 %v668
      %v670 = vpop.f32.mrb[0].mxu0
      %v671 = vadd.f32 %v440, %v670
      %v672 = vpop.f32.mrb[0].mxu0
      %673 = vmatprep.mubr.f32.mxu0 0.0
      %v674 = vand.u32 %v322, 4294901760
      %675 = vmatmul.mubr.f32.gmra.mrb[0].mxu0 %v674
      %v676 = vpop.f32.mrb[0].mxu0
      %v677 = vadd.f32 %v450, %v676
      %v678 = vpop.f32.mrb[0].mxu0
      %679 = vmatprep.mubr.f32.mxu0 0.0
      %v680 = vand.u32 %v325, 4294901760
      %681 = vmatmul.mubr.f32.gmra.mrb[0].mxu0 %v680
      %v682 = vpop.f32.mrb[0].mxu0
      %v683 = vadd.f32 %v460, %v682
      %v684 = vpop.f32.mrb[0].mxu0
      %685 = vmatprep.mubr.f32.mxu0 0.0
      %v686 = vand.u32 %v328, 4294901760
      %687 = vmatmul.mubr.f32.gmra.mrb[0].mxu0 %v686
      %v688 = vpop.f32.mrb[0].mxu0
      %v689 = vadd.f32 %v470, %v688
      %v690 = vpop.f32.mrb[0].mxu0
      %691 = vmatprep.mubr.f32.mxu0 0.0
      %v692 = vand.u32 %v331, 4294901760
      %693 = vmatmul.mubr.f32.gmra.mrb[0].mxu0 %v692
      %v694 = vpop.f32.mrb[0].mxu0
      %v695 = vadd.f32 %v480, %v694
      %v696 = vpop.f32.mrb[0].mxu0
      %697 = vmatprep.mubr.f32.mxu0 0.0
      %v698 = vand.u32 %v334, 4294901760
      %699 = vmatmul.mubr.f32.gmra.mrb[0].mxu0 %v698
      %v700 = vpop.f32.mrb[0].mxu0
      %v701 = vadd.f32 %v490, %v700
      %v702 = vpop.f32.mrb[0].mxu0
      %703 = vmatprep.mubr.f32.mxu0 0.0
      %v704 = vand.u32 %v337, 4294901760
      %705 = vmatmul.mubr.f32.gmra.mrb[0].mxu0 %v704
      %v706 = vpop.f32.mrb[0].mxu0
      %v707 = vadd.f32 %v500, %v706
      %v708 = vpop.f32.mrb[0].mxu0
      %709 = vmatprep.mubr.f32.mxu0 0.0
      %v710 = vand.u32 %v340, 4294901760
      %711 = vmatmul.mubr.f32.gmra.mrb[0].mxu0 %v710
      %v712 = vpop.f32.mrb[0].mxu0
      %v713 = vadd.f32 %v510, %v712
      %v714 = vpop.f32.mrb[0].mxu0
      %715 = vmatprep.mubr.f32.mxu0 0.0
      %v716 = vand.u32 %v343, 4294901760
      %717 = vmatmul.mubr.f32.gmra.mrb[0].mxu0 %v716
      %v718 = vpop.f32.mrb[0].mxu0
      %v719 = vadd.f32 %v520, %v718
      %v720 = vpop.f32.mrb[0].mxu0
      %721 = vmatprep.mubr.f32.mxu0 0.0
      %v722 = vand.u32 %v346, 4294901760
      %723 = vmatmul.mubr.f32.gmra.mrb[0].mxu0 %v722
      %v724 = vpop.f32.mrb[0].mxu0
      %v725 = vadd.f32 %v530, %v724
      %v726 = vpop.f32.mrb[0].mxu0
      %727 = vmatprep.mubr.f32.mxu0 0.0
      %v728 = vand.u32 %v349, 4294901760
      %729 = vmatmul.mubr.f32.gmra.mrb[0].mxu0 %v728
      %v730 = vpop.f32.mrb[0].mxu0
      %v731 = vadd.f32 %v540, %v730
      %v732 = vpop.f32.mrb[0].mxu0
      %733 = vmatprep.mubr.f32.mxu0 0.0
      %v734 = vand.u32 %v352, 4294901760
      %735 = vmatmul.mubr.f32.gmra.mrb[0].mxu0 %v734
      %v736 = vpop.f32.mrb[0].mxu0
      %v737 = vadd.f32 %v550, %v736
      %v738 = vpop.f32.mrb[0].mxu0
      %739 = vmatprep.mubr.f32.mxu0 0.0
      %v740 = vand.u32 %v355, 4294901760
      %741 = vmatmul.mubr.f32.gmra.mrb[0].mxu0 %v740
      %v742 = vpop.f32.mrb[0].mxu0
      %v743 = vadd.f32 %v560, %v742
      %v744 = vpop.f32.mrb[0].mxu0
      %745 = vmatprep.mubr.f32.mxu0 0.0
      %v746 = vand.u32 %v358, 4294901760
      %747 = vmatmul.mubr.f32.gmra.mrb[0].mxu0 %v746
      %v748 = vpop.f32.mrb[0].mxu0
      %v749 = vadd.f32 %v570, %v748
      %v750 = vpop.f32.mrb[0].mxu0
      %751 = vmatprep.mubr.f32.mxu0 0.0
      %v752 = vand.u32 %v361, 4294901760
      %753 = vmatmul.mubr.f32.gmra.mrb[0].mxu0 %v752
      %v754 = vpop.f32.mrb[0].mxu0
      %v755 = vadd.f32 %v580, %v754
      %v756 = vpop.f32.mrb[0].mxu0
      %757 = vmatprep.mubr.f32.mxu0 0.0
      %v758 = vand.u32 %v364, 4294901760
      %759 = vmatmul.mubr.f32.gmra.mrb[0].mxu0 %v758
      %v760 = vpop.f32.mrb[0].mxu0
      %v761 = vadd.f32 %v590, %v760
      %v762 = vpop.f32.mrb[0].mxu0
      %763 = vdwg.mxu0
      %764 = vmatprep.subr.mxu0 0.0
      %v765 = vand.u32 %v315, 4294901760
      %v766 = vsub.f32 %v315, %v765
      %767 = vmatpush1.msra.mxu0 %v766
      %768 = vmatprep.subr.mxu0 0.0
      %v769 = vand.u32 %v316, 4294901760
      %v770 = vsub.f32 %v316, %v769
      %771 = vmatpush1.msra.mxu0 %v770
      %772 = vmatprep.subr.mxu0 0.0
      %773 = vmatpush1.msra.mxu0 0.0
      %774 = vmatprep.subr.mxu0 0.0
      %775 = vmatpush1.msra.mxu0 0.0
      %776 = vmatprep.subr.mxu0 0.0
      %777 = vmatpush1.msra.mxu0 0.0
      %778 = vmatprep.subr.mxu0 0.0
      %779 = vmatpush1.msra.mxu0 0.0
      %780 = vmatprep.subr.mxu0 0.0
      %781 = vmatpush1.msra.mxu0 0.0
      %782 = vmatprep.subr.mxu0 0.0
      %783 = vmatpush1.msra.mxu0 0.0
      %784 = vmatprep.subr.mxu0 0.0
      %785 = vmatpush1.msra.mxu0 0.0
      %786 = vmatprep.subr.mxu0 0.0
      %787 = vmatpush1.msra.mxu0 0.0
      %788 = vmatprep.subr.mxu0 0.0
      %789 = vmatpush1.msra.mxu0 0.0
      %790 = vmatprep.subr.mxu0 0.0
      %791 = vmatpush1.msra.mxu0 0.0
      %792 = vmatprep.subr.mxu0 0.0
      %793 = vmatpush1.msra.mxu0 0.0
      %794 = vmatprep.subr.mxu0 0.0
      %795 = vmatpush1.msra.mxu0 0.0
      %796 = vmatprep.subr.mxu0 0.0
      %797 = vmatpush1.msra.mxu0 0.0
      %798 = vmatprep.subr.mxu0 0.0
      %799 = vmatpush1.msra.mxu0 0.0
      %800 = vmatprep.subr.mxu0 0.0
      %801 = vmatpush1.msra.mxu0 0.0
      %802 = vmatprep.subr.mxu0 0.0
      %803 = vmatpush1.msra.mxu0 0.0
      %804 = vmatprep.subr.mxu0 0.0
      %805 = vmatpush1.msra.mxu0 0.0
      %806 = vmatprep.subr.mxu0 0.0
      %807 = vmatpush1.msra.mxu0 0.0
      %808 = vmatprep.subr.mxu0 0.0
      %809 = vmatpush1.msra.mxu0 0.0
      %810 = vmatprep.subr.mxu0 0.0
      %811 = vmatpush1.msra.mxu0 0.0
      %812 = vmatprep.subr.mxu0 0.0
      %813 = vmatpush1.msra.mxu0 0.0
      %814 = vmatprep.subr.mxu0 0.0
      %815 = vmatpush1.msra.mxu0 0.0
      %816 = vmatprep.subr.mxu0 0.0
      %817 = vmatpush1.msra.mxu0 0.0
      %818 = vmatprep.subr.mxu0 0.0
      %819 = vmatpush1.msra.mxu0 0.0
      %820 = vmatprep.subr.mxu0 0.0
      %821 = vmatpush1.msra.mxu0 0.0
      %822 = vmatprep.subr.mxu0 0.0
      %823 = vmatpush1.msra.mxu0 0.0
      %824 = vmatprep.subr.mxu0 0.0
      %825 = vmatpush1.msra.mxu0 0.0
      %826 = vmatprep.subr.mxu0 0.0
      %827 = vmatpush1.msra.mxu0 0.0
      %828 = vmatprep.subr.mxu0 0.0
      %829 = vmatpush1.msra.mxu0 0.0
      %830 = vmatprep.subr.mxu0 0.0
      %831 = vmatpush1.msra.mxu0 0.0
      %832 = vmatprep.mubr.f32.mxu0 0.0
      %v833 = vand.u32 %v319, 4294901760
      %v834 = vsub.f32 %v319, %v833
      %835 = vmatmul.mubr.f32.gmra.mrb[0].mxu0 %v834
      %v836 = vpop.f32.mrb[0].mxu0
      %v837 = vadd.f32 %v671, %v836
      %v838 = vpop.f32.mrb[0].mxu0
      %839 = vmatprep.mubr.f32.mxu0 0.0
      %v840 = vand.u32 %v322, 4294901760
      %v841 = vsub.f32 %v322, %v840
      %842 = vmatmul.mubr.f32.gmra.mrb[0].mxu0 %v841
      %v843 = vpop.f32.mrb[0].mxu0
      %v844 = vadd.f32 %v677, %v843
      %v845 = vpop.f32.mrb[0].mxu0
      %846 = vmatprep.mubr.f32.mxu0 0.0
      %v847 = vand.u32 %v325, 4294901760
      %v848 = vsub.f32 %v325, %v847
      %849 = vmatmul.mubr.f32.gmra.mrb[0].mxu0 %v848
      %v850 = vpop.f32.mrb[0].mxu0
      %v851 = vadd.f32 %v683, %v850
      %v852 = vpop.f32.mrb[0].mxu0
      %853 = vmatprep.mubr.f32.mxu0 0.0
      %v854 = vand.u32 %v328, 4294901760
      %v855 = vsub.f32 %v328, %v854
      %856 = vmatmul.mubr.f32.gmra.mrb[0].mxu0 %v855
      %v857 = vpop.f32.mrb[0].mxu0
      %v858 = vadd.f32 %v689, %v857
      %v859 = vpop.f32.mrb[0].mxu0
      %860 = vmatprep.mubr.f32.mxu0 0.0
      %v861 = vand.u32 %v331, 4294901760
      %v862 = vsub.f32 %v331, %v861
      %863 = vmatmul.mubr.f32.gmra.mrb[0].mxu0 %v862
      %v864 = vpop.f32.mrb[0].mxu0
      %v865 = vadd.f32 %v695, %v864
      %v866 = vpop.f32.mrb[0].mxu0
      %867 = vmatprep.mubr.f32.mxu0 0.0
      %v868 = vand.u32 %v334, 4294901760
      %v869 = vsub.f32 %v334, %v868
      %870 = vmatmul.mubr.f32.gmra.mrb[0].mxu0 %v869
      %v871 = vpop.f32.mrb[0].mxu0
      %v872 = vadd.f32 %v701, %v871
      %v873 = vpop.f32.mrb[0].mxu0
      %874 = vmatprep.mubr.f32.mxu0 0.0
      %v875 = vand.u32 %v337, 4294901760
      %v876 = vsub.f32 %v337, %v875
      %877 = vmatmul.mubr.f32.gmra.mrb[0].mxu0 %v876
      %v878 = vpop.f32.mrb[0].mxu0
      %v879 = vadd.f32 %v707, %v878
      %v880 = vpop.f32.mrb[0].mxu0
      %881 = vmatprep.mubr.f32.mxu0 0.0
      %v882 = vand.u32 %v340, 4294901760
      %v883 = vsub.f32 %v340, %v882
      %884 = vmatmul.mubr.f32.gmra.mrb[0].mxu0 %v883
      %v885 = vpop.f32.mrb[0].mxu0
      %v886 = vadd.f32 %v713, %v885
      %v887 = vpop.f32.mrb[0].mxu0
      %888 = vmatprep.mubr.f32.mxu0 0.0
      %v889 = vand.u32 %v343, 4294901760
      %v890 = vsub.f32 %v343, %v889
      %891 = vmatmul.mubr.f32.gmra.mrb[0].mxu0 %v890
      %v892 = vpop.f32.mrb[0].mxu0
      %v893 = vadd.f32 %v719, %v892
      %v894 = vpop.f32.mrb[0].mxu0
      %895 = vmatprep.mubr.f32.mxu0 0.0
      %v896 = vand.u32 %v346, 4294901760
      %v897 = vsub.f32 %v346, %v896
      %898 = vmatmul.mubr.f32.gmra.mrb[0].mxu0 %v897
      %v899 = vpop.f32.mrb[0].mxu0
      %v900 = vadd.f32 %v725, %v899
      %v901 = vpop.f32.mrb[0].mxu0
      %902 = vmatprep.mubr.f32.mxu0 0.0
      %v903 = vand.u32 %v349, 4294901760
      %v904 = vsub.f32 %v349, %v903
      %905 = vmatmul.mubr.f32.gmra.mrb[0].mxu0 %v904
      %v906 = vpop.f32.mrb[0].mxu0
      %v907 = vadd.f32 %v731, %v906
      %v908 = vpop.f32.mrb[0].mxu0
      %909 = vmatprep.mubr.f32.mxu0 0.0
      %v910 = vand.u32 %v352, 4294901760
      %v911 = vsub.f32 %v352, %v910
      %912 = vmatmul.mubr.f32.gmra.mrb[0].mxu0 %v911
      %v913 = vpop.f32.mrb[0].mxu0
      %v914 = vadd.f32 %v737, %v913
      %v915 = vpop.f32.mrb[0].mxu0
      %916 = vmatprep.mubr.f32.mxu0 0.0
      %v917 = vand.u32 %v355, 4294901760
      %v918 = vsub.f32 %v355, %v917
      %919 = vmatmul.mubr.f32.gmra.mrb[0].mxu0 %v918
      %v920 = vpop.f32.mrb[0].mxu0
      %v921 = vadd.f32 %v743, %v920
      %v922 = vpop.f32.mrb[0].mxu0
      %923 = vmatprep.mubr.f32.mxu0 0.0
      %v924 = vand.u32 %v358, 4294901760
      %v925 = vsub.f32 %v358, %v924
      %926 = vmatmul.mubr.f32.gmra.mrb[0].mxu0 %v925
      %v927 = vpop.f32.mrb[0].mxu0
      %v928 = vadd.f32 %v749, %v927
      %v929 = vpop.f32.mrb[0].mxu0
      %930 = vmatprep.mubr.f32.mxu0 0.0
      %v931 = vand.u32 %v361, 4294901760
      %v932 = vsub.f32 %v361, %v931
      %933 = vmatmul.mubr.f32.gmra.mrb[0].mxu0 %v932
      %v934 = vpop.f32.mrb[0].mxu0
      %v935 = vadd.f32 %v755, %v934
      %v936 = vpop.f32.mrb[0].mxu0
      %937 = vmatprep.mubr.f32.mxu0 0.0
      %v938 = vand.u32 %v364, 4294901760
      %v939 = vsub.f32 %v364, %v938
      %940 = vmatmul.mubr.f32.gmra.mrb[0].mxu0 %v939
      %v941 = vpop.f32.mrb[0].mxu0
      %v942 = vadd.f32 %v761, %v941
      %v943 = vpop.f32.mrb[0].mxu0
      %944 = vdwg.mxu0
      %945 = vmatprep.subr.mxu0 0.0
      %v946 = vand.u32 %v315, 4294901760
      %947 = vmatpush1.msra.mxu0 %v946
      %948 = vmatprep.subr.mxu0 0.0
      %v949 = vand.u32 %v316, 4294901760
      %950 = vmatpush1.msra.mxu0 %v949
      %951 = vmatprep.subr.mxu0 0.0
      %952 = vmatpush1.msra.mxu0 0.0
      %953 = vmatprep.subr.mxu0 0.0
      %954 = vmatpush1.msra.mxu0 0.0
      %955 = vmatprep.subr.mxu0 0.0
      %956 = vmatpush1.msra.mxu0 0.0
      %957 = vmatprep.subr.mxu0 0.0
      %958 = vmatpush1.msra.mxu0 0.0
      %959 = vmatprep.subr.mxu0 0.0
      %960 = vmatpush1.msra.mxu0 0.0
      %961 = vmatprep.subr.mxu0 0.0
      %962 = vmatpush1.msra.mxu0 0.0
      %963 = vmatprep.subr.mxu0 0.0
      %964 = vmatpush1.msra.mxu0 0.0
      %965 = vmatprep.subr.mxu0 0.0
      %966 = vmatpush1.msra.mxu0 0.0
      %967 = vmatprep.subr.mxu0 0.0
      %968 = vmatpush1.msra.mxu0 0.0
      %969 = vmatprep.subr.mxu0 0.0
      %970 = vmatpush1.msra.mxu0 0.0
      %971 = vmatprep.subr.mxu0 0.0
      %972 = vmatpush1.msra.mxu0 0.0
      %973 = vmatprep.subr.mxu0 0.0
      %974 = vmatpush1.msra.mxu0 0.0
      %975 = vmatprep.subr.mxu0 0.0
      %976 = vmatpush1.msra.mxu0 0.0
      %977 = vmatprep.subr.mxu0 0.0
      %978 = vmatpush1.msra.mxu0 0.0
      %979 = vmatprep.subr.mxu0 0.0
      %980 = vmatpush1.msra.mxu0 0.0
      %981 = vmatprep.subr.mxu0 0.0
      %982 = vmatpush1.msra.mxu0 0.0
      %983 = vmatprep.subr.mxu0 0.0
      %984 = vmatpush1.msra.mxu0 0.0
      %985 = vmatprep.subr.mxu0 0.0
      %986 = vmatpush1.msra.mxu0 0.0
      %987 = vmatprep.subr.mxu0 0.0
      %988 = vmatpush1.msra.mxu0 0.0
      %989 = vmatprep.subr.mxu0 0.0
      %990 = vmatpush1.msra.mxu0 0.0
      %991 = vmatprep.subr.mxu0 0.0
      %992 = vmatpush1.msra.mxu0 0.0
      %993 = vmatprep.subr.mxu0 0.0
      %994 = vmatpush1.msra.mxu0 0.0
      %995 = vmatprep.subr.mxu0 0.0
      %996 = vmatpush1.msra.mxu0 0.0
      %997 = vmatprep.subr.mxu0 0.0
      %998 = vmatpush1.msra.mxu0 0.0
      %999 = vmatprep.subr.mxu0 0.0
      %1000 = vmatpush1.msra.mxu0 0.0
      %1001 = vmatprep.subr.mxu0 0.0
      %1002 = vmatpush1.msra.mxu0 0.0
      %1003 = vmatprep.subr.mxu0 0.0
      %1004 = vmatpush1.msra.mxu0 0.0
      %1005 = vmatprep.subr.mxu0 0.0
      %1006 = vmatpush1.msra.mxu0 0.0
      %1007 = vmatprep.subr.mxu0 0.0
      %1008 = vmatpush1.msra.mxu0 0.0
      %1009 = vmatprep.subr.mxu0 0.0
      %1010 = vmatpush1.msra.mxu0 0.0
      %1011 = vmatprep.mubr.f32.mxu0 0.0
      %v1012 = vand.u32 %v319, 4294901760
      %v1013 = vsub.f32 %v319, %v1012
      %v1014 = vand.u32 %v1013, 4294901760
      %1015 = vmatmul.mubr.f32.gmra.mrb[0].mxu0 %v1014
      %v1016 = vpop.f32.mrb[0].mxu0
      %v1017 = vadd.f32 %v837, %v1016
      %v1018 = vpop.f32.mrb[0].mxu0
      %1019 = vmatprep.mubr.f32.mxu0 0.0
      %v1020 = vand.u32 %v322, 4294901760
      %v1021 = vsub.f32 %v322, %v1020
      %v1022 = vand.u32 %v1021, 4294901760
      %1023 = vmatmul.mubr.f32.gmra.mrb[0].mxu0 %v1022
      %v1024 = vpop.f32.mrb[0].mxu0
      %v1025 = vadd.f32 %v844, %v1024
      %v1026 = vpop.f32.mrb[0].mxu0
      %1027 = vmatprep.mubr.f32.mxu0 0.0
      %v1028 = vand.u32 %v325, 4294901760
      %v1029 = vsub.f32 %v325, %v1028
      %v1030 = vand.u32 %v1029, 4294901760
      %1031 = vmatmul.mubr.f32.gmra.mrb[0].mxu0 %v1030
      %v1032 = vpop.f32.mrb[0].mxu0
      %v1033 = vadd.f32 %v851, %v1032
      %v1034 = vpop.f32.mrb[0].mxu0
      %1035 = vmatprep.mubr.f32.mxu0 0.0
      %v1036 = vand.u32 %v328, 4294901760
      %v1037 = vsub.f32 %v328, %v1036
      %v1038 = vand.u32 %v1037, 4294901760
      %1039 = vmatmul.mubr.f32.gmra.mrb[0].mxu0 %v1038
      %v1040 = vpop.f32.mrb[0].mxu0
      %v1041 = vadd.f32 %v858, %v1040
      %v1042 = vpop.f32.mrb[0].mxu0
      %1043 = vmatprep.mubr.f32.mxu0 0.0
      %v1044 = vand.u32 %v331, 4294901760
      %v1045 = vsub.f32 %v331, %v1044
      %v1046 = vand.u32 %v1045, 4294901760
      %1047 = vmatmul.mubr.f32.gmra.mrb[0].mxu0 %v1046
      %v1048 = vpop.f32.mrb[0].mxu0
      %v1049 = vadd.f32 %v865, %v1048
      %v1050 = vpop.f32.mrb[0].mxu0
      %1051 = vmatprep.mubr.f32.mxu0 0.0
      %v1052 = vand.u32 %v334, 4294901760
      %v1053 = vsub.f32 %v334, %v1052
      %v1054 = vand.u32 %v1053, 4294901760
      %1055 = vmatmul.mubr.f32.gmra.mrb[0].mxu0 %v1054
      %v1056 = vpop.f32.mrb[0].mxu0
      %v1057 = vadd.f32 %v872, %v1056
      %v1058 = vpop.f32.mrb[0].mxu0
      %1059 = vmatprep.mubr.f32.mxu0 0.0
      %v1060 = vand.u32 %v337, 4294901760
      %v1061 = vsub.f32 %v337, %v1060
      %v1062 = vand.u32 %v1061, 4294901760
      %1063 = vmatmul.mubr.f32.gmra.mrb[0].mxu0 %v1062
      %v1064 = vpop.f32.mrb[0].mxu0
      %v1065 = vadd.f32 %v879, %v1064
      %v1066 = vpop.f32.mrb[0].mxu0
      %1067 = vmatprep.mubr.f32.mxu0 0.0
      %v1068 = vand.u32 %v340, 4294901760
      %v1069 = vsub.f32 %v340, %v1068
      %v1070 = vand.u32 %v1069, 4294901760
      %1071 = vmatmul.mubr.f32.gmra.mrb[0].mxu0 %v1070
      %v1072 = vpop.f32.mrb[0].mxu0
      %v1073 = vadd.f32 %v886, %v1072
      %v1074 = vpop.f32.mrb[0].mxu0
      %1075 = vmatprep.mubr.f32.mxu0 0.0
      %v1076 = vand.u32 %v343, 4294901760
      %v1077 = vsub.f32 %v343, %v1076
      %v1078 = vand.u32 %v1077, 4294901760
      %1079 = vmatmul.mubr.f32.gmra.mrb[0].mxu0 %v1078
      %v1080 = vpop.f32.mrb[0].mxu0
      %v1081 = vadd.f32 %v893, %v1080
      %v1082 = vpop.f32.mrb[0].mxu0
      %1083 = vmatprep.mubr.f32.mxu0 0.0
      %v1084 = vand.u32 %v346, 4294901760
      %v1085 = vsub.f32 %v346, %v1084
      %v1086 = vand.u32 %v1085, 4294901760
      %1087 = vmatmul.mubr.f32.gmra.mrb[0].mxu0 %v1086
      %v1088 = vpop.f32.mrb[0].mxu0
      %v1089 = vadd.f32 %v900, %v1088
      %v1090 = vpop.f32.mrb[0].mxu0
      %1091 = vmatprep.mubr.f32.mxu0 0.0
      %v1092 = vand.u32 %v349, 4294901760
      %v1093 = vsub.f32 %v349, %v1092
      %v1094 = vand.u32 %v1093, 4294901760
      %1095 = vmatmul.mubr.f32.gmra.mrb[0].mxu0 %v1094
      %v1096 = vpop.f32.mrb[0].mxu0
      %v1097 = vadd.f32 %v907, %v1096
      %v1098 = vpop.f32.mrb[0].mxu0
      %1099 = vmatprep.mubr.f32.mxu0 0.0
      %v1100 = vand.u32 %v352, 4294901760
      %v1101 = vsub.f32 %v352, %v1100
      %v1102 = vand.u32 %v1101, 4294901760
      %1103 = vmatmul.mubr.f32.gmra.mrb[0].mxu0 %v1102
      %v1104 = vpop.f32.mrb[0].mxu0
      %v1105 = vadd.f32 %v914, %v1104
      %v1106 = vpop.f32.mrb[0].mxu0
      %1107 = vmatprep.mubr.f32.mxu0 0.0
      %v1108 = vand.u32 %v355, 4294901760
      %v1109 = vsub.f32 %v355, %v1108
      %v1110 = vand.u32 %v1109, 4294901760
      %1111 = vmatmul.mubr.f32.gmra.mrb[0].mxu0 %v1110
      %v1112 = vpop.f32.mrb[0].mxu0
      %v1113 = vadd.f32 %v921, %v1112
      %v1114 = vpop.f32.mrb[0].mxu0
      %1115 = vmatprep.mubr.f32.mxu0 0.0
      %v1116 = vand.u32 %v358, 4294901760
      %v1117 = vsub.f32 %v358, %v1116
      %v1118 = vand.u32 %v1117, 4294901760
      %1119 = vmatmul.mubr.f32.gmra.mrb[0].mxu0 %v1118
      %v1120 = vpop.f32.mrb[0].mxu0
      %v1121 = vadd.f32 %v928, %v1120
      %v1122 = vpop.f32.mrb[0].mxu0
      %1123 = vmatprep.mubr.f32.mxu0 0.0
      %v1124 = vand.u32 %v361, 4294901760
      %v1125 = vsub.f32 %v361, %v1124
      %v1126 = vand.u32 %v1125, 4294901760
      %1127 = vmatmul.mubr.f32.gmra.mrb[0].mxu0 %v1126
      %v1128 = vpop.f32.mrb[0].mxu0
      %v1129 = vadd.f32 %v935, %v1128
      %v1130 = vpop.f32.mrb[0].mxu0
      %1131 = vmatprep.mubr.f32.mxu0 0.0
      %v1132 = vand.u32 %v364, 4294901760
      %v1133 = vsub.f32 %v364, %v1132
      %v1134 = vand.u32 %v1133, 4294901760
      %1135 = vmatmul.mubr.f32.gmra.mrb[0].mxu0 %v1134
      %v1136 = vpop.f32.mrb[0].mxu0
      %v1137 = vadd.f32 %v942, %v1136
      %v1138 = vpop.f32.mrb[0].mxu0
      %1139 = vdwg.mxu0
      %1140 = vmatprep.subr.mxu0 0.0
      %v1141 = vand.u32 %v315, 4294901760
      %v1142 = vsub.f32 %v315, %v1141
      %v1143 = vand.u32 %v1142, 4294901760
      %1144 = vmatpush1.msra.mxu0 %v1143
      %1145 = vmatprep.subr.mxu0 0.0
      %v1146 = vand.u32 %v316, 4294901760
      %v1147 = vsub.f32 %v316, %v1146
      %v1148 = vand.u32 %v1147, 4294901760
      %1149 = vmatpush1.msra.mxu0 %v1148
      %1150 = vmatprep.subr.mxu0 0.0
      %1151 = vmatpush1.msra.mxu0 0.0
      %1152 = vmatprep.subr.mxu0 0.0
      %1153 = vmatpush1.msra.mxu0 0.0
      %1154 = vmatprep.subr.mxu0 0.0
      %1155 = vmatpush1.msra.mxu0 0.0
      %1156 = vmatprep.subr.mxu0 0.0
      %1157 = vmatpush1.msra.mxu0 0.0
      %1158 = vmatprep.subr.mxu0 0.0
      %1159 = vmatpush1.msra.mxu0 0.0
      %1160 = vmatprep.subr.mxu0 0.0
      %1161 = vmatpush1.msra.mxu0 0.0
      %1162 = vmatprep.subr.mxu0 0.0
      %1163 = vmatpush1.msra.mxu0 0.0
      %1164 = vmatprep.subr.mxu0 0.0
      %1165 = vmatpush1.msra.mxu0 0.0
      %1166 = vmatprep.subr.mxu0 0.0
      %1167 = vmatpush1.msra.mxu0 0.0
      %1168 = vmatprep.subr.mxu0 0.0
      %1169 = vmatpush1.msra.mxu0 0.0
      %1170 = vmatprep.subr.mxu0 0.0
      %1171 = vmatpush1.msra.mxu0 0.0
      %1172 = vmatprep.subr.mxu0 0.0
      %1173 = vmatpush1.msra.mxu0 0.0
      %1174 = vmatprep.subr.mxu0 0.0
      %1175 = vmatpush1.msra.mxu0 0.0
      %1176 = vmatprep.subr.mxu0 0.0
      %1177 = vmatpush1.msra.mxu0 0.0
      %1178 = vmatprep.subr.mxu0 0.0
      %1179 = vmatpush1.msra.mxu0 0.0
      %1180 = vmatprep.subr.mxu0 0.0
      %1181 = vmatpush1.msra.mxu0 0.0
      %1182 = vmatprep.subr.mxu0 0.0
      %1183 = vmatpush1.msra.mxu0 0.0
      %1184 = vmatprep.subr.mxu0 0.0
      %1185 = vmatpush1.msra.mxu0 0.0
      %1186 = vmatprep.subr.mxu0 0.0
      %1187 = vmatpush1.msra.mxu0 0.0
      %1188 = vmatprep.subr.mxu0 0.0
      %1189 = vmatpush1.msra.mxu0 0.0
      %1190 = vmatprep.subr.mxu0 0.0
      %1191 = vmatpush1.msra.mxu0 0.0
      %1192 = vmatprep.subr.mxu0 0.0
      %1193 = vmatpush1.msra.mxu0 0.0
      %1194 = vmatprep.subr.mxu0 0.0
      %1195 = vmatpush1.msra.mxu0 0.0
      %1196 = vmatprep.subr.mxu0 0.0
      %1197 = vmatpush1.msra.mxu0 0.0
      %1198 = vmatprep.subr.mxu0 0.0
      %1199 = vmatpush1.msra.mxu0 0.0
      %1200 = vmatprep.subr.mxu0 0.0
      %1201 = vmatpush1.msra.mxu0 0.0
      %1202 = vmatprep.subr.mxu0 0.0
      %1203 = vmatpush1.msra.mxu0 0.0
      %1204 = vmatprep.subr.mxu0 0.0
      %1205 = vmatpush1.msra.mxu0 0.0
      %1206 = vmatprep.subr.mxu0 0.0
      %1207 = vmatpush1.msra.mxu0 0.0
      %1208 = vmatprep.subr.mxu0 0.0
      %1209 = vmatpush1.msra.mxu0 0.0
      %1210 = vmatprep.mubr.f32.mxu0 0.0
      %v1211 = vand.u32 %v319, 4294901760
      %1212 = vmatmul.mubr.f32.gmra.mrb[0].mxu0 %v1211
      %v1213 = vpop.f32.mrb[0].mxu0
      %v1214 = vadd.f32 %v1017, %v1213
      %v1215 = vpop.f32.mrb[0].mxu0
      %1216 = vmatprep.mubr.f32.mxu0 0.0
      %v1217 = vand.u32 %v322, 4294901760
      %1218 = vmatmul.mubr.f32.gmra.mrb[0].mxu0 %v1217
      %v1219 = vpop.f32.mrb[0].mxu0
      %v1220 = vadd.f32 %v1025, %v1219
      %v1221 = vpop.f32.mrb[0].mxu0
      %1222 = vmatprep.mubr.f32.mxu0 0.0
      %v1223 = vand.u32 %v325, 4294901760
      %1224 = vmatmul.mubr.f32.gmra.mrb[0].mxu0 %v1223
      %v1225 = vpop.f32.mrb[0].mxu0
      %v1226 = vadd.f32 %v1033, %v1225
      %v1227 = vpop.f32.mrb[0].mxu0
      %1228 = vmatprep.mubr.f32.mxu0 0.0
      %v1229 = vand.u32 %v328, 4294901760
      %1230 = vmatmul.mubr.f32.gmra.mrb[0].mxu0 %v1229
      %v1231 = vpop.f32.mrb[0].mxu0
      %v1232 = vadd.f32 %v1041, %v1231
      %v1233 = vpop.f32.mrb[0].mxu0
      %1234 = vmatprep.mubr.f32.mxu0 0.0
      %v1235 = vand.u32 %v331, 4294901760
      %1236 = vmatmul.mubr.f32.gmra.mrb[0].mxu0 %v1235
      %v1237 = vpop.f32.mrb[0].mxu0
      %v1238 = vadd.f32 %v1049, %v1237
      %v1239 = vpop.f32.mrb[0].mxu0
      %1240 = vmatprep.mubr.f32.mxu0 0.0
      %v1241 = vand.u32 %v334, 4294901760
      %1242 = vmatmul.mubr.f32.gmra.mrb[0].mxu0 %v1241
      %v1243 = vpop.f32.mrb[0].mxu0
      %v1244 = vadd.f32 %v1057, %v1243
      %v1245 = vpop.f32.mrb[0].mxu0
      %1246 = vmatprep.mubr.f32.mxu0 0.0
      %v1247 = vand.u32 %v337, 4294901760
      %1248 = vmatmul.mubr.f32.gmra.mrb[0].mxu0 %v1247
      %v1249 = vpop.f32.mrb[0].mxu0
      %v1250 = vadd.f32 %v1065, %v1249
      %v1251 = vpop.f32.mrb[0].mxu0
      %1252 = vmatprep.mubr.f32.mxu0 0.0
      %v1253 = vand.u32 %v340, 4294901760
      %1254 = vmatmul.mubr.f32.gmra.mrb[0].mxu0 %v1253
      %v1255 = vpop.f32.mrb[0].mxu0
      %v1256 = vadd.f32 %v1073, %v1255
      %v1257 = vpop.f32.mrb[0].mxu0
      %1258 = vmatprep.mubr.f32.mxu0 0.0
      %v1259 = vand.u32 %v343, 4294901760
      %1260 = vmatmul.mubr.f32.gmra.mrb[0].mxu0 %v1259
      %v1261 = vpop.f32.mrb[0].mxu0
      %v1262 = vadd.f32 %v1081, %v1261
      %v1263 = vpop.f32.mrb[0].mxu0
      %1264 = vmatprep.mubr.f32.mxu0 0.0
      %v1265 = vand.u32 %v346, 4294901760
      %1266 = vmatmul.mubr.f32.gmra.mrb[0].mxu0 %v1265
      %v1267 = vpop.f32.mrb[0].mxu0
      %v1268 = vadd.f32 %v1089, %v1267
      %v1269 = vpop.f32.mrb[0].mxu0
      %1270 = vmatprep.mubr.f32.mxu0 0.0
      %v1271 = vand.u32 %v349, 4294901760
      %1272 = vmatmul.mubr.f32.gmra.mrb[0].mxu0 %v1271
      %v1273 = vpop.f32.mrb[0].mxu0
      %v1274 = vadd.f32 %v1097, %v1273
      %v1275 = vpop.f32.mrb[0].mxu0
      %1276 = vmatprep.mubr.f32.mxu0 0.0
      %v1277 = vand.u32 %v352, 4294901760
      %1278 = vmatmul.mubr.f32.gmra.mrb[0].mxu0 %v1277
      %v1279 = vpop.f32.mrb[0].mxu0
      %v1280 = vadd.f32 %v1105, %v1279
      %v1281 = vpop.f32.mrb[0].mxu0
      %1282 = vmatprep.mubr.f32.mxu0 0.0
      %v1283 = vand.u32 %v355, 4294901760
      %1284 = vmatmul.mubr.f32.gmra.mrb[0].mxu0 %v1283
      %v1285 = vpop.f32.mrb[0].mxu0
      %v1286 = vadd.f32 %v1113, %v1285
      %v1287 = vpop.f32.mrb[0].mxu0
      %1288 = vmatprep.mubr.f32.mxu0 0.0
      %v1289 = vand.u32 %v358, 4294901760
      %1290 = vmatmul.mubr.f32.gmra.mrb[0].mxu0 %v1289
      %v1291 = vpop.f32.mrb[0].mxu0
      %v1292 = vadd.f32 %v1121, %v1291
      %v1293 = vpop.f32.mrb[0].mxu0
      %1294 = vmatprep.mubr.f32.mxu0 0.0
      %v1295 = vand.u32 %v361, 4294901760
      %1296 = vmatmul.mubr.f32.gmra.mrb[0].mxu0 %v1295
      %v1297 = vpop.f32.mrb[0].mxu0
      %v1298 = vadd.f32 %v1129, %v1297
      %v1299 = vpop.f32.mrb[0].mxu0
      %1300 = vmatprep.mubr.f32.mxu0 0.0
      %v1301 = vand.u32 %v364, 4294901760
      %1302 = vmatmul.mubr.f32.gmra.mrb[0].mxu0 %v1301
      %v1303 = vpop.f32.mrb[0].mxu0
      %v1304 = vadd.f32 %v1137, %v1303
      %v1305 = vpop.f32.mrb[0].mxu0
      %1306 = vdwg.mxu0
      %1307 = vmatprep.subr.mxu0 0.0
      %v1308 = vand.u32 %v315, 4294901760
      %1309 = vmatpush1.msra.mxu0 %v1308
      %1310 = vmatprep.subr.mxu0 0.0
      %v1311 = vand.u32 %v316, 4294901760
      %1312 = vmatpush1.msra.mxu0 %v1311
      %1313 = vmatprep.subr.mxu0 0.0
      %1314 = vmatpush1.msra.mxu0 0.0
      %1315 = vmatprep.subr.mxu0 0.0
      %1316 = vmatpush1.msra.mxu0 0.0
      %1317 = vmatprep.subr.mxu0 0.0
      %1318 = vmatpush1.msra.mxu0 0.0
      %1319 = vmatprep.subr.mxu0 0.0
      %1320 = vmatpush1.msra.mxu0 0.0
      %1321 = vmatprep.subr.mxu0 0.0
      %1322 = vmatpush1.msra.mxu0 0.0
      %1323 = vmatprep.subr.mxu0 0.0
      %1324 = vmatpush1.msra.mxu0 0.0
      %1325 = vmatprep.subr.mxu0 0.0
      %1326 = vmatpush1.msra.mxu0 0.0
      %1327 = vmatprep.subr.mxu0 0.0
      %1328 = vmatpush1.msra.mxu0 0.0
      %1329 = vmatprep.subr.mxu0 0.0
      %1330 = vmatpush1.msra.mxu0 0.0
      %1331 = vmatprep.subr.mxu0 0.0
      %1332 = vmatpush1.msra.mxu0 0.0
      %1333 = vmatprep.subr.mxu0 0.0
      %1334 = vmatpush1.msra.mxu0 0.0
      %1335 = vmatprep.subr.mxu0 0.0
      %1336 = vmatpush1.msra.mxu0 0.0
      %1337 = vmatprep.subr.mxu0 0.0
      %1338 = vmatpush1.msra.mxu0 0.0
      %1339 = vmatprep.subr.mxu0 0.0
      %1340 = vmatpush1.msra.mxu0 0.0
      %1341 = vmatprep.subr.mxu0 0.0
      %1342 = vmatpush1.msra.mxu0 0.0
      %1343 = vmatprep.subr.mxu0 0.0
      %1344 = vmatpush1.msra.mxu0 0.0
      %1345 = vmatprep.subr.mxu0 0.0
      %1346 = vmatpush1.msra.mxu0 0.0
      %1347 = vmatprep.subr.mxu0 0.0
      %1348 = vmatpush1.msra.mxu0 0.0
      %1349 = vmatprep.subr.mxu0 0.0
      %1350 = vmatpush1.msra.mxu0 0.0
      %1351 = vmatprep.subr.mxu0 0.0
      %1352 = vmatpush1.msra.mxu0 0.0
      %1353 = vmatprep.subr.mxu0 0.0
      %1354 = vmatpush1.msra.mxu0 0.0
      %1355 = vmatprep.subr.mxu0 0.0
      %1356 = vmatpush1.msra.mxu0 0.0
      %1357 = vmatprep.subr.mxu0 0.0
      %1358 = vmatpush1.msra.mxu0 0.0
      %1359 = vmatprep.subr.mxu0 0.0
      %1360 = vmatpush1.msra.mxu0 0.0
      %1361 = vmatprep.subr.mxu0 0.0
      %1362 = vmatpush1.msra.mxu0 0.0
      %1363 = vmatprep.subr.mxu0 0.0
      %1364 = vmatpush1.msra.mxu0 0.0
      %1365 = vmatprep.subr.mxu0 0.0
      %1366 = vmatpush1.msra.mxu0 0.0
      %1367 = vmatprep.subr.mxu0 0.0
      %1368 = vmatpush1.msra.mxu0 0.0
      %1369 = vmatprep.subr.mxu0 0.0
      %1370 = vmatpush1.msra.mxu0 0.0
      %1371 = vmatprep.subr.mxu0 0.0
      %1372 = vmatpush1.msra.mxu0 0.0
      %1373 = vmatprep.mubr.f32.mxu0 0.0
      %v1374 = vand.u32 %v319, 4294901760
      %1375 = vmatmul.mubr.f32.gmra.mrb[0].mxu0 %v1374
      %v1376 = vpop.f32.mrb[0].mxu0
      %v1377 = vadd.f32 %v1214, %v1376
      %v1378 = vpop.f32.mrb[0].mxu0
      %1379 = vmatprep.mubr.f32.mxu0 0.0
      %v1380 = vand.u32 %v322, 4294901760
      %1381 = vmatmul.mubr.f32.gmra.mrb[0].mxu0 %v1380
      %v1382 = vpop.f32.mrb[0].mxu0
      %v1383 = vadd.f32 %v1220, %v1382
      %v1384 = vpop.f32.mrb[0].mxu0
      %1385 = vmatprep.mubr.f32.mxu0 0.0
      %v1386 = vand.u32 %v325, 4294901760
      %1387 = vmatmul.mubr.f32.gmra.mrb[0].mxu0 %v1386
      %v1388 = vpop.f32.mrb[0].mxu0
      %v1389 = vadd.f32 %v1226, %v1388
      %v1390 = vpop.f32.mrb[0].mxu0
      %1391 = vmatprep.mubr.f32.mxu0 0.0
      %v1392 = vand.u32 %v328, 4294901760
      %1393 = vmatmul.mubr.f32.gmra.mrb[0].mxu0 %v1392
      %v1394 = vpop.f32.mrb[0].mxu0
      %v1395 = vadd.f32 %v1232, %v1394
      %v1396 = vpop.f32.mrb[0].mxu0
      %1397 = vmatprep.mubr.f32.mxu0 0.0
      %v1398 = vand.u32 %v331, 4294901760
      %1399 = vmatmul.mubr.f32.gmra.mrb[0].mxu0 %v1398
      %v1400 = vpop.f32.mrb[0].mxu0
      %v1401 = vadd.f32 %v1238, %v1400
      %v1402 = vpop.f32.mrb[0].mxu0
      %1403 = vmatprep.mubr.f32.mxu0 0.0
      %v1404 = vand.u32 %v334, 4294901760
      %1405 = vmatmul.mubr.f32.gmra.mrb[0].mxu0 %v1404
      %v1406 = vpop.f32.mrb[0].mxu0
      %v1407 = vadd.f32 %v1244, %v1406
      %v1408 = vpop.f32.mrb[0].mxu0
      %1409 = vmatprep.mubr.f32.mxu0 0.0
      %v1410 = vand.u32 %v337, 4294901760
      %1411 = vmatmul.mubr.f32.gmra.mrb[0].mxu0 %v1410
      %v1412 = vpop.f32.mrb[0].mxu0
      %v1413 = vadd.f32 %v1250, %v1412
      %v1414 = vpop.f32.mrb[0].mxu0
      %1415 = vmatprep.mubr.f32.mxu0 0.0
      %v1416 = vand.u32 %v340, 4294901760
      %1417 = vmatmul.mubr.f32.gmra.mrb[0].mxu0 %v1416
      %v1418 = vpop.f32.mrb[0].mxu0
      %v1419 = vadd.f32 %v1256, %v1418
      %v1420 = vpop.f32.mrb[0].mxu0
      %1421 = vmatprep.mubr.f32.mxu0 0.0
      %v1422 = vand.u32 %v343, 4294901760
      %1423 = vmatmul.mubr.f32.gmra.mrb[0].mxu0 %v1422
      %v1424 = vpop.f32.mrb[0].mxu0
      %v1425 = vadd.f32 %v1262, %v1424
      %v1426 = vpop.f32.mrb[0].mxu0
      %1427 = vmatprep.mubr.f32.mxu0 0.0
      %v1428 = vand.u32 %v346, 4294901760
      %1429 = vmatmul.mubr.f32.gmra.mrb[0].mxu0 %v1428
      %v1430 = vpop.f32.mrb[0].mxu0
      %v1431 = vadd.f32 %v1268, %v1430
      %v1432 = vpop.f32.mrb[0].mxu0
      %1433 = vmatprep.mubr.f32.mxu0 0.0
      %v1434 = vand.u32 %v349, 4294901760
      %1435 = vmatmul.mubr.f32.gmra.mrb[0].mxu0 %v1434
      %v1436 = vpop.f32.mrb[0].mxu0
      %v1437 = vadd.f32 %v1274, %v1436
      %v1438 = vpop.f32.mrb[0].mxu0
      %1439 = vmatprep.mubr.f32.mxu0 0.0
      %v1440 = vand.u32 %v352, 4294901760
      %1441 = vmatmul.mubr.f32.gmra.mrb[0].mxu0 %v1440
      %v1442 = vpop.f32.mrb[0].mxu0
      %v1443 = vadd.f32 %v1280, %v1442
      %v1444 = vpop.f32.mrb[0].mxu0
      %1445 = vmatprep.mubr.f32.mxu0 0.0
      %v1446 = vand.u32 %v355, 4294901760
      %1447 = vmatmul.mubr.f32.gmra.mrb[0].mxu0 %v1446
      %v1448 = vpop.f32.mrb[0].mxu0
      %v1449 = vadd.f32 %v1286, %v1448
      %v1450 = vpop.f32.mrb[0].mxu0
      %1451 = vmatprep.mubr.f32.mxu0 0.0
      %v1452 = vand.u32 %v358, 4294901760
      %1453 = vmatmul.mubr.f32.gmra.mrb[0].mxu0 %v1452
      %v1454 = vpop.f32.mrb[0].mxu0
      %v1455 = vadd.f32 %v1292, %v1454
      %v1456 = vpop.f32.mrb[0].mxu0
      %1457 = vmatprep.mubr.f32.mxu0 0.0
      %v1458 = vand.u32 %v361, 4294901760
      %1459 = vmatmul.mubr.f32.gmra.mrb[0].mxu0 %v1458
      %v1460 = vpop.f32.mrb[0].mxu0
      %v1461 = vadd.f32 %v1298, %v1460
      %v1462 = vpop.f32.mrb[0].mxu0
      %1463 = vmatprep.mubr.f32.mxu0 0.0
      %v1464 = vand.u32 %v364, 4294901760
      %1465 = vmatmul.mubr.f32.gmra.mrb[0].mxu0 %v1464
      %v1466 = vpop.f32.mrb[0].mxu0
      %v1467 = vadd.f32 %v1304, %v1466
      %v1468 = vpop.f32.mrb[0].mxu0
      %1469 = vdwg.mxu0
      %v1470 = vxor.u32 %v1377, 2147483648
      %v1471 = vxor.u32 %v1383, 2147483648
      %v1472 = vxor.u32 %v1389, 2147483648
      %v1473 = vxor.u32 %v1395, 2147483648
      %v1474 = vxor.u32 %v1401, 2147483648
      %v1475 = vxor.u32 %v1407, 2147483648
      %v1476 = vxor.u32 %v1413, 2147483648
      %v1477 = vxor.u32 %v1419, 2147483648
      %v1478 = vxor.u32 %v1425, 2147483648
      %v1479 = vxor.u32 %v1431, 2147483648
      %v1480 = vxor.u32 %v1437, 2147483648
      %v1481 = vxor.u32 %v1443, 2147483648
      %v1482 = vxor.u32 %v1449, 2147483648
      %v1483 = vxor.u32 %v1455, 2147483648
      %v1484 = vxor.u32 %v1461, 2147483648
      %v1485 = vxor.u32 %v1467, 2147483648
      %v1486 = vmul.f32 %v1470, 1.442695
      %v1487 = vpow.pop %v1486
      %v1488 = vmul.f32 %v1471, 1.442695
      %v1489 = vpow.pop %v1488
      %v1490 = vmul.f32 %v1472, 1.442695
      %v1491 = vpow.pop %v1490
      %v1492 = vmul.f32 %v1473, 1.442695
      %v1493 = vpow.pop %v1492
      %v1494 = vmul.f32 %v1474, 1.442695
      %v1495 = vpow.pop %v1494
      %v1496 = vmul.f32 %v1475, 1.442695
      %v1497 = vpow.pop %v1496
      %v1498 = vmul.f32 %v1476, 1.442695
      %v1499 = vpow.pop %v1498
      %v1500 = vmul.f32 %v1477, 1.442695
      %v1501 = vpow.pop %v1500
      %v1502 = vmul.f32 %v1478, 1.442695
      %v1503 = vpow.pop %v1502
      %v1504 = vmul.f32 %v1479, 1.442695
      %v1505 = vpow.pop %v1504
      %v1506 = vmul.f32 %v1480, 1.442695
      %v1507 = vpow.pop %v1506
      %v1508 = vmul.f32 %v1481, 1.442695
      %v1509 = vpow.pop %v1508
      %v1510 = vmul.f32 %v1482, 1.442695
      %v1511 = vpow.pop %v1510
      %v1512 = vmul.f32 %v1483, 1.442695
      %v1513 = vpow.pop %v1512
      %v1514 = vmul.f32 %v1484, 1.442695
      %v1515 = vpow.pop %v1514
      %v1516 = vmul.f32 %v1485, 1.442695
      %v1517 = vpow.pop %v1516
      %v1518 = vadd.f32 %v1487, 1.0
      %v1519 = vadd.f32 %v1489, 1.0
      %v1520 = vadd.f32 %v1491, 1.0
      %v1521 = vadd.f32 %v1493, 1.0
      %v1522 = vadd.f32 %v1495, 1.0
      %v1523 = vadd.f32 %v1497, 1.0
      %v1524 = vadd.f32 %v1499, 1.0
      %v1525 = vadd.f32 %v1501, 1.0
      %v1526 = vadd.f32 %v1503, 1.0
      %v1527 = vadd.f32 %v1505, 1.0
      %v1528 = vadd.f32 %v1507, 1.0
      %v1529 = vadd.f32 %v1509, 1.0
      %v1530 = vadd.f32 %v1511, 1.0
      %v1531 = vadd.f32 %v1513, 1.0
      %v1532 = vadd.f32 %v1515, 1.0
      %v1533 = vadd.f32 %v1517, 1.0
      %v1534 = vrcp.pop %v1518
      %v1535 = vmul.f32 1.0, %v1534
      %v1536 = vrcp.pop %v1519
      %v1537 = vmul.f32 1.0, %v1536
      %v1538 = vrcp.pop %v1520
      %v1539 = vmul.f32 1.0, %v1538
      %v1540 = vrcp.pop %v1521
      %v1541 = vmul.f32 1.0, %v1540
      %v1542 = vrcp.pop %v1522
      %v1543 = vmul.f32 1.0, %v1542
      %v1544 = vrcp.pop %v1523
      %v1545 = vmul.f32 1.0, %v1544
      %v1546 = vrcp.pop %v1524
      %v1547 = vmul.f32 1.0, %v1546
      %v1548 = vrcp.pop %v1525
      %v1549 = vmul.f32 1.0, %v1548
      %v1550 = vrcp.pop %v1526
      %v1551 = vmul.f32 1.0, %v1550
      %v1552 = vrcp.pop %v1527
      %v1553 = vmul.f32 1.0, %v1552
      %v1554 = vrcp.pop %v1528
      %v1555 = vmul.f32 1.0, %v1554
      %v1556 = vrcp.pop %v1529
      %v1557 = vmul.f32 1.0, %v1556
      %v1558 = vrcp.pop %v1530
      %v1559 = vmul.f32 1.0, %v1558
      %v1560 = vrcp.pop %v1531
      %v1561 = vmul.f32 1.0, %v1560
      %v1562 = vrcp.pop %v1532
      %v1563 = vmul.f32 1.0, %v1562
      %v1564 = vrcp.pop %v1533
      %v1565 = vmul.f32 1.0, %v1564
      %v1566 = vmul.f32 %v1377, %v1535
      %v1567 = vmul.f32 %v1383, %v1537
      %v1568 = vmul.f32 %v1389, %v1539
      %v1569 = vmul.f32 %v1395, %v1541
      %v1570 = vmul.f32 %v1401, %v1543
      %v1571 = vmul.f32 %v1407, %v1545
      %v1572 = vmul.f32 %v1413, %v1547
      %v1573 = vmul.f32 %v1419, %v1549
      %v1574 = vmul.f32 %v1425, %v1551
      %v1575 = vmul.f32 %v1431, %v1553
      %v1576 = vmul.f32 %v1437, %v1555
      %v1577 = vmul.f32 %v1443, %v1557
      %v1578 = vmul.f32 %v1449, %v1559
      %v1579 = vmul.f32 %v1455, %v1561
      %v1580 = vmul.f32 %v1461, %v1563
      %v1581 = vmul.f32 %v1467, %v1565
      %v1582 = vld [vmem:[%s2] sm:$0xff]
      %v1583 = vld [vmem:[%s2 + $0x8] sm:$0xff]
      %v1584 = vld [vmem:[%s2 + $0x10] sm:$0xff]
      %v1585 = vld [vmem:[%s2 + $0x18] sm:$0xff]
      %v1586 = vld [vmem:[%s3] sm:$0x1]
      %v1588 = vlaneseq
      %v1589 = vshrl.u32 %v1588, 7
      %v1590 = vsub.s32 0, %v1589
      %v1591 = vrot.slane %v1586, %v1590
      %vm1593 = vcmask 261120
      %v1595 = vsel %vm1593, %v1566, 0
      %v1598 = vsel %vm1593, %v1567, 0
      %v1601 = vsel %vm1593, %v1568, 0
      %v1604 = vsel %vm1593, %v1569, 0
      %v1607 = vsel %vm1593, %v1570, 0
      %v1610 = vsel %vm1593, %v1571, 0
      %v1613 = vsel %vm1593, %v1572, 0
      %v1616 = vsel %vm1593, %v1573, 0
      %v1619 = vsel %vm1593, %v1574, 0
      %v1622 = vsel %vm1593, %v1575, 0
      %v1625 = vsel %vm1593, %v1576, 0
      %v1628 = vsel %vm1593, %v1577, 0
      %v1631 = vsel %vm1593, %v1578, 0
      %v1634 = vsel %vm1593, %v1579, 0
      %v1637 = vsel %vm1593, %v1580, 0
      %v1640 = vsel %vm1593, %v1581, 0
      %1642 = vmatprep.subr.mxu0 0.0
      %v1643 = vand.u32 %v1582, 4294901760
      %1644 = vmatpush1.msra.mxu0 %v1643
      %1645 = vmatprep.subr.mxu0 0.0
      %v1646 = vand.u32 %v1583, 4294901760
      %1647 = vmatpush1.msra.mxu0 %v1646
      %1648 = vmatprep.subr.mxu0 0.0
      %v1649 = vand.u32 %v1584, 4294901760
      %1650 = vmatpush1.msra.mxu0 %v1649
      %1651 = vmatprep.subr.mxu0 0.0
      %v1652 = vand.u32 %v1585, 4294901760
      %1653 = vmatpush1.msra.mxu0 %v1652
      %1654 = vmatprep.subr.mxu0 0.0
      %1655 = vmatpush1.msra.mxu0 0.0
      %1656 = vmatprep.subr.mxu0 0.0
      %1657 = vmatpush1.msra.mxu0 0.0
      %1658 = vmatprep.subr.mxu0 0.0
      %1659 = vmatpush1.msra.mxu0 0.0
      %1660 = vmatprep.subr.mxu0 0.0
      %1661 = vmatpush1.msra.mxu0 0.0
      %1662 = vmatprep.subr.mxu0 0.0
      %1663 = vmatpush1.msra.mxu0 0.0
      %1664 = vmatprep.subr.mxu0 0.0
      %1665 = vmatpush1.msra.mxu0 0.0
      %1666 = vmatprep.subr.mxu0 0.0
      %1667 = vmatpush1.msra.mxu0 0.0
      %1668 = vmatprep.subr.mxu0 0.0
      %1669 = vmatpush1.msra.mxu0 0.0
      %1670 = vmatprep.subr.mxu0 0.0
      %1671 = vmatpush1.msra.mxu0 0.0
      %1672 = vmatprep.subr.mxu0 0.0
      %1673 = vmatpush1.msra.mxu0 0.0
      %1674 = vmatprep.subr.mxu0 0.0
      %1675 = vmatpush1.msra.mxu0 0.0
      %1676 = vmatprep.subr.mxu0 0.0
      %1677 = vmatpush1.msra.mxu0 0.0
      %1678 = vmatprep.subr.mxu0 0.0
      %1679 = vmatpush1.msra.mxu0 0.0
      %1680 = vmatprep.subr.mxu0 0.0
      %1681 = vmatpush1.msra.mxu0 0.0
      %1682 = vmatprep.subr.mxu0 0.0
      %1683 = vmatpush1.msra.mxu0 0.0
      %1684 = vmatprep.subr.mxu0 0.0
      %1685 = vmatpush1.msra.mxu0 0.0
      %1686 = vmatprep.subr.mxu0 0.0
      %1687 = vmatpush1.msra.mxu0 0.0
      %1688 = vmatprep.subr.mxu0 0.0
      %1689 = vmatpush1.msra.mxu0 0.0
      %1690 = vmatprep.subr.mxu0 0.0
      %1691 = vmatpush1.msra.mxu0 0.0
      %1692 = vmatprep.subr.mxu0 0.0
      %1693 = vmatpush1.msra.mxu0 0.0
      %1694 = vmatprep.subr.mxu0 0.0
      %1695 = vmatpush1.msra.mxu0 0.0
      %1696 = vmatprep.subr.mxu0 0.0
      %1697 = vmatpush1.msra.mxu0 0.0
      %1698 = vmatprep.subr.mxu0 0.0
      %1699 = vmatpush1.msra.mxu0 0.0
      %1700 = vmatprep.subr.mxu0 0.0
      %1701 = vmatpush1.msra.mxu0 0.0
      %1702 = vmatprep.subr.mxu0 0.0
      %1703 = vmatpush1.msra.mxu0 0.0
      %1704 = vmatprep.subr.mxu0 0.0
      %1705 = vmatpush1.msra.mxu0 0.0
      %1706 = vmatprep.subr.mxu0 0.0
      %1707 = vmatpush1.msra.mxu0 0.0
      %1708 = vmatprep.subr.mxu0 0.0
      %1709 = vmatpush1.msra.mxu0 0.0
      %1710 = vmatprep.mubr.f32.mxu0 0.0
      %v1711 = vand.u32 %v1595, 4294901760
      %v1712 = vsub.f32 %v1595, %v1711
      %v1713 = vand.u32 %v1712, 4294901760
      %v1714 = vsub.f32 %v1712, %v1713
      %v1715 = vand.u32 %v1714, 4294901760
      %1716 = vmatmul.mubr.f32.gmra.mrb[0].mxu0 %v1715
      %v1717 = vpop.f32.mrb[0].mxu0
      %v1718 = vadd.f32 %v1591, %v1717
      %v1719 = vpop.f32.mrb[0].mxu0
      %1720 = vmatprep.mubr.f32.mxu0 0.0
      %v1721 = vand.u32 %v1598, 4294901760
      %v1722 = vsub.f32 %v1598, %v1721
      %v1723 = vand.u32 %v1722, 4294901760
      %v1724 = vsub.f32 %v1722, %v1723
      %v1725 = vand.u32 %v1724, 4294901760
      %1726 = vmatmul.mubr.f32.gmra.mrb[0].mxu0 %v1725
      %v1727 = vpop.f32.mrb[0].mxu0
      %v1728 = vadd.f32 %v1591, %v1727
      %v1729 = vpop.f32.mrb[0].mxu0
      %1730 = vmatprep.mubr.f32.mxu0 0.0
      %v1731 = vand.u32 %v1601, 4294901760
      %v1732 = vsub.f32 %v1601, %v1731
      %v1733 = vand.u32 %v1732, 4294901760
      %v1734 = vsub.f32 %v1732, %v1733
      %v1735 = vand.u32 %v1734, 4294901760
      %1736 = vmatmul.mubr.f32.gmra.mrb[0].mxu0 %v1735
      %v1737 = vpop.f32.mrb[0].mxu0
      %v1738 = vadd.f32 %v1591, %v1737
      %v1739 = vpop.f32.mrb[0].mxu0
      %1740 = vmatprep.mubr.f32.mxu0 0.0
      %v1741 = vand.u32 %v1604, 4294901760
      %v1742 = vsub.f32 %v1604, %v1741
      %v1743 = vand.u32 %v1742, 4294901760
      %v1744 = vsub.f32 %v1742, %v1743
      %v1745 = vand.u32 %v1744, 4294901760
      %1746 = vmatmul.mubr.f32.gmra.mrb[0].mxu0 %v1745
      %v1747 = vpop.f32.mrb[0].mxu0
      %v1748 = vadd.f32 %v1591, %v1747
      %v1749 = vpop.f32.mrb[0].mxu0
      %1750 = vmatprep.mubr.f32.mxu0 0.0
      %v1751 = vand.u32 %v1607, 4294901760
      %v1752 = vsub.f32 %v1607, %v1751
      %v1753 = vand.u32 %v1752, 4294901760
      %v1754 = vsub.f32 %v1752, %v1753
      %v1755 = vand.u32 %v1754, 4294901760
      %1756 = vmatmul.mubr.f32.gmra.mrb[0].mxu0 %v1755
      %v1757 = vpop.f32.mrb[0].mxu0
      %v1758 = vadd.f32 %v1591, %v1757
      %v1759 = vpop.f32.mrb[0].mxu0
      %1760 = vmatprep.mubr.f32.mxu0 0.0
      %v1761 = vand.u32 %v1610, 4294901760
      %v1762 = vsub.f32 %v1610, %v1761
      %v1763 = vand.u32 %v1762, 4294901760
      %v1764 = vsub.f32 %v1762, %v1763
      %v1765 = vand.u32 %v1764, 4294901760
      %1766 = vmatmul.mubr.f32.gmra.mrb[0].mxu0 %v1765
      %v1767 = vpop.f32.mrb[0].mxu0
      %v1768 = vadd.f32 %v1591, %v1767
      %v1769 = vpop.f32.mrb[0].mxu0
      %1770 = vmatprep.mubr.f32.mxu0 0.0
      %v1771 = vand.u32 %v1613, 4294901760
      %v1772 = vsub.f32 %v1613, %v1771
      %v1773 = vand.u32 %v1772, 4294901760
      %v1774 = vsub.f32 %v1772, %v1773
      %v1775 = vand.u32 %v1774, 4294901760
      %1776 = vmatmul.mubr.f32.gmra.mrb[0].mxu0 %v1775
      %v1777 = vpop.f32.mrb[0].mxu0
      %v1778 = vadd.f32 %v1591, %v1777
      %v1779 = vpop.f32.mrb[0].mxu0
      %1780 = vmatprep.mubr.f32.mxu0 0.0
      %v1781 = vand.u32 %v1616, 4294901760
      %v1782 = vsub.f32 %v1616, %v1781
      %v1783 = vand.u32 %v1782, 4294901760
      %v1784 = vsub.f32 %v1782, %v1783
      %v1785 = vand.u32 %v1784, 4294901760
      %1786 = vmatmul.mubr.f32.gmra.mrb[0].mxu0 %v1785
      %v1787 = vpop.f32.mrb[0].mxu0
      %v1788 = vadd.f32 %v1591, %v1787
      %v1789 = vpop.f32.mrb[0].mxu0
      %1790 = vmatprep.mubr.f32.mxu0 0.0
      %v1791 = vand.u32 %v1619, 4294901760
      %v1792 = vsub.f32 %v1619, %v1791
      %v1793 = vand.u32 %v1792, 4294901760
      %v1794 = vsub.f32 %v1792, %v1793
      %v1795 = vand.u32 %v1794, 4294901760
      %1796 = vmatmul.mubr.f32.gmra.mrb[0].mxu0 %v1795
      %v1797 = vpop.f32.mrb[0].mxu0
      %v1798 = vadd.f32 %v1591, %v1797
      %v1799 = vpop.f32.mrb[0].mxu0
      %1800 = vmatprep.mubr.f32.mxu0 0.0
      %v1801 = vand.u32 %v1622, 4294901760
      %v1802 = vsub.f32 %v1622, %v1801
      %v1803 = vand.u32 %v1802, 4294901760
      %v1804 = vsub.f32 %v1802, %v1803
      %v1805 = vand.u32 %v1804, 4294901760
      %1806 = vmatmul.mubr.f32.gmra.mrb[0].mxu0 %v1805
      %v1807 = vpop.f32.mrb[0].mxu0
      %v1808 = vadd.f32 %v1591, %v1807
      %v1809 = vpop.f32.mrb[0].mxu0
      %1810 = vmatprep.mubr.f32.mxu0 0.0
      %v1811 = vand.u32 %v1625, 4294901760
      %v1812 = vsub.f32 %v1625, %v1811
      %v1813 = vand.u32 %v1812, 4294901760
      %v1814 = vsub.f32 %v1812, %v1813
      %v1815 = vand.u32 %v1814, 4294901760
      %1816 = vmatmul.mubr.f32.gmra.mrb[0].mxu0 %v1815
      %v1817 = vpop.f32.mrb[0].mxu0
      %v1818 = vadd.f32 %v1591, %v1817
      %v1819 = vpop.f32.mrb[0].mxu0
      %1820 = vmatprep.mubr.f32.mxu0 0.0
      %v1821 = vand.u32 %v1628, 4294901760
      %v1822 = vsub.f32 %v1628, %v1821
      %v1823 = vand.u32 %v1822, 4294901760
      %v1824 = vsub.f32 %v1822, %v1823
      %v1825 = vand.u32 %v1824, 4294901760
      %1826 = vmatmul.mubr.f32.gmra.mrb[0].mxu0 %v1825
      %v1827 = vpop.f32.mrb[0].mxu0
      %v1828 = vadd.f32 %v1591, %v1827
      %v1829 = vpop.f32.mrb[0].mxu0
      %1830 = vmatprep.mubr.f32.mxu0 0.0
      %v1831 = vand.u32 %v1631, 4294901760
      %v1832 = vsub.f32 %v1631, %v1831
      %v1833 = vand.u32 %v1832, 4294901760
      %v1834 = vsub.f32 %v1832, %v1833
      %v1835 = vand.u32 %v1834, 4294901760
      %1836 = vmatmul.mubr.f32.gmra.mrb[0].mxu0 %v1835
      %v1837 = vpop.f32.mrb[0].mxu0
      %v1838 = vadd.f32 %v1591, %v1837
      %v1839 = vpop.f32.mrb[0].mxu0
      %1840 = vmatprep.mubr.f32.mxu0 0.0
      %v1841 = vand.u32 %v1634, 4294901760
      %v1842 = vsub.f32 %v1634, %v1841
      %v1843 = vand.u32 %v1842, 4294901760
      %v1844 = vsub.f32 %v1842, %v1843
      %v1845 = vand.u32 %v1844, 4294901760
      %1846 = vmatmul.mubr.f32.gmra.mrb[0].mxu0 %v1845
      %v1847 = vpop.f32.mrb[0].mxu0
      %v1848 = vadd.f32 %v1591, %v1847
      %v1849 = vpop.f32.mrb[0].mxu0
      %1850 = vmatprep.mubr.f32.mxu0 0.0
      %v1851 = vand.u32 %v1637, 4294901760
      %v1852 = vsub.f32 %v1637, %v1851
      %v1853 = vand.u32 %v1852, 4294901760
      %v1854 = vsub.f32 %v1852, %v1853
      %v1855 = vand.u32 %v1854, 4294901760
      %1856 = vmatmul.mubr.f32.gmra.mrb[0].mxu0 %v1855
      %v1857 = vpop.f32.mrb[0].mxu0
      %v1858 = vadd.f32 %v1591, %v1857
      %v1859 = vpop.f32.mrb[0].mxu0
      %1860 = vmatprep.mubr.f32.mxu0 0.0
      %v1861 = vand.u32 %v1640, 4294901760
      %v1862 = vsub.f32 %v1640, %v1861
      %v1863 = vand.u32 %v1862, 4294901760
      %v1864 = vsub.f32 %v1862, %v1863
      %v1865 = vand.u32 %v1864, 4294901760
      %1866 = vmatmul.mubr.f32.gmra.mrb[0].mxu0 %v1865
      %v1867 = vpop.f32.mrb[0].mxu0
      %v1868 = vadd.f32 %v1591, %v1867
      %v1869 = vpop.f32.mrb[0].mxu0
      %1870 = vdwg.mxu0
      %1871 = vmatprep.subr.mxu0 0.0
      %v1872 = vand.u32 %v1582, 4294901760
      %v1873 = vsub.f32 %v1582, %v1872
      %v1874 = vand.u32 %v1873, 4294901760
      %v1875 = vsub.f32 %v1873, %v1874
      %v1876 = vand.u32 %v1875, 4294901760
      %1877 = vmatpush1.msra.mxu0 %v1876
      %1878 = vmatprep.subr.mxu0 0.0
      %v1879 = vand.u32 %v1583, 4294901760
      %v1880 = vsub.f32 %v1583, %v1879
      %v1881 = vand.u32 %v1880, 4294901760
      %v1882 = vsub.f32 %v1880, %v1881
      %v1883 = vand.u32 %v1882, 4294901760
      %1884 = vmatpush1.msra.mxu0 %v1883
      %1885 = vmatprep.subr.mxu0 0.0
      %v1886 = vand.u32 %v1584, 4294901760
      %v1887 = vsub.f32 %v1584, %v1886
      %v1888 = vand.u32 %v1887, 4294901760
      %v1889 = vsub.f32 %v1887, %v1888
      %v1890 = vand.u32 %v1889, 4294901760
      %1891 = vmatpush1.msra.mxu0 %v1890
      %1892 = vmatprep.subr.mxu0 0.0
      %v1893 = vand.u32 %v1585, 4294901760
      %v1894 = vsub.f32 %v1585, %v1893
      %v1895 = vand.u32 %v1894, 4294901760
      %v1896 = vsub.f32 %v1894, %v1895
      %v1897 = vand.u32 %v1896, 4294901760
      %1898 = vmatpush1.msra.mxu0 %v1897
      %1899 = vmatprep.subr.mxu0 0.0
      %1900 = vmatpush1.msra.mxu0 0.0
      %1901 = vmatprep.subr.mxu0 0.0
      %1902 = vmatpush1.msra.mxu0 0.0
      %1903 = vmatprep.subr.mxu0 0.0
      %1904 = vmatpush1.msra.mxu0 0.0
      %1905 = vmatprep.subr.mxu0 0.0
      %1906 = vmatpush1.msra.mxu0 0.0
      %1907 = vmatprep.subr.mxu0 0.0
      %1908 = vmatpush1.msra.mxu0 0.0
      %1909 = vmatprep.subr.mxu0 0.0
      %1910 = vmatpush1.msra.mxu0 0.0
      %1911 = vmatprep.subr.mxu0 0.0
      %1912 = vmatpush1.msra.mxu0 0.0
      %1913 = vmatprep.subr.mxu0 0.0
      %1914 = vmatpush1.msra.mxu0 0.0
      %1915 = vmatprep.subr.mxu0 0.0
      %1916 = vmatpush1.msra.mxu0 0.0
      %1917 = vmatprep.subr.mxu0 0.0
      %1918 = vmatpush1.msra.mxu0 0.0
      %1919 = vmatprep.subr.mxu0 0.0
      %1920 = vmatpush1.msra.mxu0 0.0
      %1921 = vmatprep.subr.mxu0 0.0
      %1922 = vmatpush1.msra.mxu0 0.0
      %1923 = vmatprep.subr.mxu0 0.0
      %1924 = vmatpush1.msra.mxu0 0.0
      %1925 = vmatprep.subr.mxu0 0.0
      %1926 = vmatpush1.msra.mxu0 0.0
      %1927 = vmatprep.subr.mxu0 0.0
      %1928 = vmatpush1.msra.mxu0 0.0
      %1929 = vmatprep.subr.mxu0 0.0
      %1930 = vmatpush1.msra.mxu0 0.0
      %1931 = vmatprep.subr.mxu0 0.0
      %1932 = vmatpush1.msra.mxu0 0.0
      %1933 = vmatprep.subr.mxu0 0.0
      %1934 = vmatpush1.msra.mxu0 0.0
      %1935 = vmatprep.subr.mxu0 0.0
      %1936 = vmatpush1.msra.mxu0 0.0
      %1937 = vmatprep.subr.mxu0 0.0
      %1938 = vmatpush1.msra.mxu0 0.0
      %1939 = vmatprep.subr.mxu0 0.0
      %1940 = vmatpush1.msra.mxu0 0.0
      %1941 = vmatprep.subr.mxu0 0.0
      %1942 = vmatpush1.msra.mxu0 0.0
      %1943 = vmatprep.subr.mxu0 0.0
      %1944 = vmatpush1.msra.mxu0 0.0
      %1945 = vmatprep.subr.mxu0 0.0
      %1946 = vmatpush1.msra.mxu0 0.0
      %1947 = vmatprep.subr.mxu0 0.0
      %1948 = vmatpush1.msra.mxu0 0.0
      %1949 = vmatprep.subr.mxu0 0.0
      %1950 = vmatpush1.msra.mxu0 0.0
      %1951 = vmatprep.subr.mxu0 0.0
      %1952 = vmatpush1.msra.mxu0 0.0
      %1953 = vmatprep.subr.mxu0 0.0
      %1954 = vmatpush1.msra.mxu0 0.0
      %1955 = vmatprep.mubr.f32.mxu0 0.0
      %v1956 = vand.u32 %v1595, 4294901760
      %1957 = vmatmul.mubr.f32.gmra.mrb[0].mxu0 %v1956
      %v1958 = vpop.f32.mrb[0].mxu0
      %v1959 = vadd.f32 %v1718, %v1958
      %v1960 = vpop.f32.mrb[0].mxu0
      %1961 = vmatprep.mubr.f32.mxu0 0.0
      %v1962 = vand.u32 %v1598, 4294901760
      %1963 = vmatmul.mubr.f32.gmra.mrb[0].mxu0 %v1962
      %v1964 = vpop.f32.mrb[0].mxu0
      %v1965 = vadd.f32 %v1728, %v1964
      %v1966 = vpop.f32.mrb[0].mxu0
      %1967 = vmatprep.mubr.f32.mxu0 0.0
      %v1968 = vand.u32 %v1601, 4294901760
      %1969 = vmatmul.mubr.f32.gmra.mrb[0].mxu0 %v1968
      %v1970 = vpop.f32.mrb[0].mxu0
      %v1971 = vadd.f32 %v1738, %v1970
      %v1972 = vpop.f32.mrb[0].mxu0
      %1973 = vmatprep.mubr.f32.mxu0 0.0
      %v1974 = vand.u32 %v1604, 4294901760
      %1975 = vmatmul.mubr.f32.gmra.mrb[0].mxu0 %v1974
      %v1976 = vpop.f32.mrb[0].mxu0
      %v1977 = vadd.f32 %v1748, %v1976
      %v1978 = vpop.f32.mrb[0].mxu0
      %1979 = vmatprep.mubr.f32.mxu0 0.0
      %v1980 = vand.u32 %v1607, 4294901760
      %1981 = vmatmul.mubr.f32.gmra.mrb[0].mxu0 %v1980
      %v1982 = vpop.f32.mrb[0].mxu0
      %v1983 = vadd.f32 %v1758, %v1982
      %v1984 = vpop.f32.mrb[0].mxu0
      %1985 = vmatprep.mubr.f32.mxu0 0.0
      %v1986 = vand.u32 %v1610, 4294901760
      %1987 = vmatmul.mubr.f32.gmra.mrb[0].mxu0 %v1986
      %v1988 = vpop.f32.mrb[0].mxu0
      %v1989 = vadd.f32 %v1768, %v1988
      %v1990 = vpop.f32.mrb[0].mxu0
      %1991 = vmatprep.mubr.f32.mxu0 0.0
      %v1992 = vand.u32 %v1613, 4294901760
      %1993 = vmatmul.mubr.f32.gmra.mrb[0].mxu0 %v1992
      %v1994 = vpop.f32.mrb[0].mxu0
      %v1995 = vadd.f32 %v1778, %v1994
      %v1996 = vpop.f32.mrb[0].mxu0
      %1997 = vmatprep.mubr.f32.mxu0 0.0
      %v1998 = vand.u32 %v1616, 4294901760
      %1999 = vmatmul.mubr.f32.gmra.mrb[0].mxu0 %v1998
      %v2000 = vpop.f32.mrb[0].mxu0
      %v2001 = vadd.f32 %v1788, %v2000
      %v2002 = vpop.f32.mrb[0].mxu0
      %2003 = vmatprep.mubr.f32.mxu0 0.0
      %v2004 = vand.u32 %v1619, 4294901760
      %2005 = vmatmul.mubr.f32.gmra.mrb[0].mxu0 %v2004
      %v2006 = vpop.f32.mrb[0].mxu0
      %v2007 = vadd.f32 %v1798, %v2006
      %v2008 = vpop.f32.mrb[0].mxu0
      %2009 = vmatprep.mubr.f32.mxu0 0.0
      %v2010 = vand.u32 %v1622, 4294901760
      %2011 = vmatmul.mubr.f32.gmra.mrb[0].mxu0 %v2010
      %v2012 = vpop.f32.mrb[0].mxu0
      %v2013 = vadd.f32 %v1808, %v2012
      %v2014 = vpop.f32.mrb[0].mxu0
      %2015 = vmatprep.mubr.f32.mxu0 0.0
      %v2016 = vand.u32 %v1625, 4294901760
      %2017 = vmatmul.mubr.f32.gmra.mrb[0].mxu0 %v2016
      %v2018 = vpop.f32.mrb[0].mxu0
      %v2019 = vadd.f32 %v1818, %v2018
      %v2020 = vpop.f32.mrb[0].mxu0
      %2021 = vmatprep.mubr.f32.mxu0 0.0
      %v2022 = vand.u32 %v1628, 4294901760
      %2023 = vmatmul.mubr.f32.gmra.mrb[0].mxu0 %v2022
      %v2024 = vpop.f32.mrb[0].mxu0
      %v2025 = vadd.f32 %v1828, %v2024
      %v2026 = vpop.f32.mrb[0].mxu0
      %2027 = vmatprep.mubr.f32.mxu0 0.0
      %v2028 = vand.u32 %v1631, 4294901760
      %2029 = vmatmul.mubr.f32.gmra.mrb[0].mxu0 %v2028
      %v2030 = vpop.f32.mrb[0].mxu0
      %v2031 = vadd.f32 %v1838, %v2030
      %v2032 = vpop.f32.mrb[0].mxu0
      %2033 = vmatprep.mubr.f32.mxu0 0.0
      %v2034 = vand.u32 %v1634, 4294901760
      %2035 = vmatmul.mubr.f32.gmra.mrb[0].mxu0 %v2034
      %v2036 = vpop.f32.mrb[0].mxu0
      %v2037 = vadd.f32 %v1848, %v2036
      %v2038 = vpop.f32.mrb[0].mxu0
      %2039 = vmatprep.mubr.f32.mxu0 0.0
      %v2040 = vand.u32 %v1637, 4294901760
      %2041 = vmatmul.mubr.f32.gmra.mrb[0].mxu0 %v2040
      %v2042 = vpop.f32.mrb[0].mxu0
      %v2043 = vadd.f32 %v1858, %v2042
      %v2044 = vpop.f32.mrb[0].mxu0
      %2045 = vmatprep.mubr.f32.mxu0 0.0
      %v2046 = vand.u32 %v1640, 4294901760
      %2047 = vmatmul.mubr.f32.gmra.mrb[0].mxu0 %v2046
      %v2048 = vpop.f32.mrb[0].mxu0
      %v2049 = vadd.f32 %v1868, %v2048
      %v2050 = vpop.f32.mrb[0].mxu0
      %2051 = vdwg.mxu0
      %2052 = vmatprep.subr.mxu0 0.0
      %v2053 = vand.u32 %v1582, 4294901760
      %v2054 = vsub.f32 %v1582, %v2053
      %2055 = vmatpush1.msra.mxu0 %v2054
      %2056 = vmatprep.subr.mxu0 0.0
      %v2057 = vand.u32 %v1583, 4294901760
      %v2058 = vsub.f32 %v1583, %v2057
      %2059 = vmatpush1.msra.mxu0 %v2058
      %2060 = vmatprep.subr.mxu0 0.0
      %v2061 = vand.u32 %v1584, 4294901760
      %v2062 = vsub.f32 %v1584, %v2061
      %2063 = vmatpush1.msra.mxu0 %v2062
      %2064 = vmatprep.subr.mxu0 0.0
      %v2065 = vand.u32 %v1585, 4294901760
      %v2066 = vsub.f32 %v1585, %v2065
      %2067 = vmatpush1.msra.mxu0 %v2066
      %2068 = vmatprep.subr.mxu0 0.0
      %2069 = vmatpush1.msra.mxu0 0.0
      %2070 = vmatprep.subr.mxu0 0.0
      %2071 = vmatpush1.msra.mxu0 0.0
      %2072 = vmatprep.subr.mxu0 0.0
      %2073 = vmatpush1.msra.mxu0 0.0
      %2074 = vmatprep.subr.mxu0 0.0
      %2075 = vmatpush1.msra.mxu0 0.0
      %2076 = vmatprep.subr.mxu0 0.0
      %2077 = vmatpush1.msra.mxu0 0.0
      %2078 = vmatprep.subr.mxu0 0.0
      %2079 = vmatpush1.msra.mxu0 0.0
      %2080 = vmatprep.subr.mxu0 0.0
      %2081 = vmatpush1.msra.mxu0 0.0
      %2082 = vmatprep.subr.mxu0 0.0
      %2083 = vmatpush1.msra.mxu0 0.0
      %2084 = vmatprep.subr.mxu0 0.0
      %2085 = vmatpush1.msra.mxu0 0.0
      %2086 = vmatprep.subr.mxu0 0.0
      %2087 = vmatpush1.msra.mxu0 0.0
      %2088 = vmatprep.subr.mxu0 0.0
      %2089 = vmatpush1.msra.mxu0 0.0
      %2090 = vmatprep.subr.mxu0 0.0
      %2091 = vmatpush1.msra.mxu0 0.0
      %2092 = vmatprep.subr.mxu0 0.0
      %2093 = vmatpush1.msra.mxu0 0.0
      %2094 = vmatprep.subr.mxu0 0.0
      %2095 = vmatpush1.msra.mxu0 0.0
      %2096 = vmatprep.subr.mxu0 0.0
      %2097 = vmatpush1.msra.mxu0 0.0
      %2098 = vmatprep.subr.mxu0 0.0
      %2099 = vmatpush1.msra.mxu0 0.0
      %2100 = vmatprep.subr.mxu0 0.0
      %2101 = vmatpush1.msra.mxu0 0.0
      %2102 = vmatprep.subr.mxu0 0.0
      %2103 = vmatpush1.msra.mxu0 0.0
      %2104 = vmatprep.subr.mxu0 0.0
      %2105 = vmatpush1.msra.mxu0 0.0
      %2106 = vmatprep.subr.mxu0 0.0
      %2107 = vmatpush1.msra.mxu0 0.0
      %2108 = vmatprep.subr.mxu0 0.0
      %2109 = vmatpush1.msra.mxu0 0.0
      %2110 = vmatprep.subr.mxu0 0.0
      %2111 = vmatpush1.msra.mxu0 0.0
      %2112 = vmatprep.subr.mxu0 0.0
      %2113 = vmatpush1.msra.mxu0 0.0
      %2114 = vmatprep.subr.mxu0 0.0
      %2115 = vmatpush1.msra.mxu0 0.0
      %2116 = vmatprep.subr.mxu0 0.0
      %2117 = vmatpush1.msra.mxu0 0.0
      %2118 = vmatprep.subr.mxu0 0.0
      %2119 = vmatpush1.msra.mxu0 0.0
      %2120 = vmatprep.subr.mxu0 0.0
      %2121 = vmatpush1.msra.mxu0 0.0
      %2122 = vmatprep.subr.mxu0 0.0
      %2123 = vmatpush1.msra.mxu0 0.0
      %2124 = vmatprep.mubr.f32.mxu0 0.0
      %v2125 = vand.u32 %v1595, 4294901760
      %v2126 = vsub.f32 %v1595, %v2125
      %2127 = vmatmul.mubr.f32.gmra.mrb[0].mxu0 %v2126
      %v2128 = vpop.f32.mrb[0].mxu0
      %v2129 = vadd.f32 %v1959, %v2128
      %v2130 = vpop.f32.mrb[0].mxu0
      %2131 = vmatprep.mubr.f32.mxu0 0.0
      %v2132 = vand.u32 %v1598, 4294901760
      %v2133 = vsub.f32 %v1598, %v2132
      %2134 = vmatmul.mubr.f32.gmra.mrb[0].mxu0 %v2133
      %v2135 = vpop.f32.mrb[0].mxu0
      %v2136 = vadd.f32 %v1965, %v2135
      %v2137 = vpop.f32.mrb[0].mxu0
      %2138 = vmatprep.mubr.f32.mxu0 0.0
      %v2139 = vand.u32 %v1601, 4294901760
      %v2140 = vsub.f32 %v1601, %v2139
      %2141 = vmatmul.mubr.f32.gmra.mrb[0].mxu0 %v2140
      %v2142 = vpop.f32.mrb[0].mxu0
      %v2143 = vadd.f32 %v1971, %v2142
      %v2144 = vpop.f32.mrb[0].mxu0
      %2145 = vmatprep.mubr.f32.mxu0 0.0
      %v2146 = vand.u32 %v1604, 4294901760
      %v2147 = vsub.f32 %v1604, %v2146
      %2148 = vmatmul.mubr.f32.gmra.mrb[0].mxu0 %v2147
      %v2149 = vpop.f32.mrb[0].mxu0
      %v2150 = vadd.f32 %v1977, %v2149
      %v2151 = vpop.f32.mrb[0].mxu0
      %2152 = vmatprep.mubr.f32.mxu0 0.0
      %v2153 = vand.u32 %v1607, 4294901760
      %v2154 = vsub.f32 %v1607, %v2153
      %2155 = vmatmul.mubr.f32.gmra.mrb[0].mxu0 %v2154
      %v2156 = vpop.f32.mrb[0].mxu0
      %v2157 = vadd.f32 %v1983, %v2156
      %v2158 = vpop.f32.mrb[0].mxu0
      %2159 = vmatprep.mubr.f32.mxu0 0.0
      %v2160 = vand.u32 %v1610, 4294901760
      %v2161 = vsub.f32 %v1610, %v2160
      %2162 = vmatmul.mubr.f32.gmra.mrb[0].mxu0 %v2161
      %v2163 = vpop.f32.mrb[0].mxu0
      %v2164 = vadd.f32 %v1989, %v2163
      %v2165 = vpop.f32.mrb[0].mxu0
      %2166 = vmatprep.mubr.f32.mxu0 0.0
      %v2167 = vand.u32 %v1613, 4294901760
      %v2168 = vsub.f32 %v1613, %v2167
      %2169 = vmatmul.mubr.f32.gmra.mrb[0].mxu0 %v2168
      %v2170 = vpop.f32.mrb[0].mxu0
      %v2171 = vadd.f32 %v1995, %v2170
      %v2172 = vpop.f32.mrb[0].mxu0
      %2173 = vmatprep.mubr.f32.mxu0 0.0
      %v2174 = vand.u32 %v1616, 4294901760
      %v2175 = vsub.f32 %v1616, %v2174
      %2176 = vmatmul.mubr.f32.gmra.mrb[0].mxu0 %v2175
      %v2177 = vpop.f32.mrb[0].mxu0
      %v2178 = vadd.f32 %v2001, %v2177
      %v2179 = vpop.f32.mrb[0].mxu0
      %2180 = vmatprep.mubr.f32.mxu0 0.0
      %v2181 = vand.u32 %v1619, 4294901760
      %v2182 = vsub.f32 %v1619, %v2181
      %2183 = vmatmul.mubr.f32.gmra.mrb[0].mxu0 %v2182
      %v2184 = vpop.f32.mrb[0].mxu0
      %v2185 = vadd.f32 %v2007, %v2184
      %v2186 = vpop.f32.mrb[0].mxu0
      %2187 = vmatprep.mubr.f32.mxu0 0.0
      %v2188 = vand.u32 %v1622, 4294901760
      %v2189 = vsub.f32 %v1622, %v2188
      %2190 = vmatmul.mubr.f32.gmra.mrb[0].mxu0 %v2189
      %v2191 = vpop.f32.mrb[0].mxu0
      %v2192 = vadd.f32 %v2013, %v2191
      %v2193 = vpop.f32.mrb[0].mxu0
      %2194 = vmatprep.mubr.f32.mxu0 0.0
      %v2195 = vand.u32 %v1625, 4294901760
      %v2196 = vsub.f32 %v1625, %v2195
      %2197 = vmatmul.mubr.f32.gmra.mrb[0].mxu0 %v2196
      %v2198 = vpop.f32.mrb[0].mxu0
      %v2199 = vadd.f32 %v2019, %v2198
      %v2200 = vpop.f32.mrb[0].mxu0
      %2201 = vmatprep.mubr.f32.mxu0 0.0
      %v2202 = vand.u32 %v1628, 4294901760
      %v2203 = vsub.f32 %v1628, %v2202
      %2204 = vmatmul.mubr.f32.gmra.mrb[0].mxu0 %v2203
      %v2205 = vpop.f32.mrb[0].mxu0
      %v2206 = vadd.f32 %v2025, %v2205
      %v2207 = vpop.f32.mrb[0].mxu0
      %2208 = vmatprep.mubr.f32.mxu0 0.0
      %v2209 = vand.u32 %v1631, 4294901760
      %v2210 = vsub.f32 %v1631, %v2209
      %2211 = vmatmul.mubr.f32.gmra.mrb[0].mxu0 %v2210
      %v2212 = vpop.f32.mrb[0].mxu0
      %v2213 = vadd.f32 %v2031, %v2212
      %v2214 = vpop.f32.mrb[0].mxu0
      %2215 = vmatprep.mubr.f32.mxu0 0.0
      %v2216 = vand.u32 %v1634, 4294901760
      %v2217 = vsub.f32 %v1634, %v2216
      %2218 = vmatmul.mubr.f32.gmra.mrb[0].mxu0 %v2217
      %v2219 = vpop.f32.mrb[0].mxu0
      %v2220 = vadd.f32 %v2037, %v2219
      %v2221 = vpop.f32.mrb[0].mxu0
      %2222 = vmatprep.mubr.f32.mxu0 0.0
      %v2223 = vand.u32 %v1637, 4294901760
      %v2224 = vsub.f32 %v1637, %v2223
      %2225 = vmatmul.mubr.f32.gmra.mrb[0].mxu0 %v2224
      %v2226 = vpop.f32.mrb[0].mxu0
      %v2227 = vadd.f32 %v2043, %v2226
      %v2228 = vpop.f32.mrb[0].mxu0
      %2229 = vmatprep.mubr.f32.mxu0 0.0
      %v2230 = vand.u32 %v1640, 4294901760
      %v2231 = vsub.f32 %v1640, %v2230
      %2232 = vmatmul.mubr.f32.gmra.mrb[0].mxu0 %v2231
      %v2233 = vpop.f32.mrb[0].mxu0
      %v2234 = vadd.f32 %v2049, %v2233
      %v2235 = vpop.f32.mrb[0].mxu0
      %2236 = vdwg.mxu0
      %2237 = vmatprep.subr.mxu0 0.0
      %v2238 = vand.u32 %v1582, 4294901760
      %2239 = vmatpush1.msra.mxu0 %v2238
      %2240 = vmatprep.subr.mxu0 0.0
      %v2241 = vand.u32 %v1583, 4294901760
      %2242 = vmatpush1.msra.mxu0 %v2241
      %2243 = vmatprep.subr.mxu0 0.0
      %v2244 = vand.u32 %v1584, 4294901760
      %2245 = vmatpush1.msra.mxu0 %v2244
      %2246 = vmatprep.subr.mxu0 0.0
      %v2247 = vand.u32 %v1585, 4294901760
      %2248 = vmatpush1.msra.mxu0 %v2247
      %2249 = vmatprep.subr.mxu0 0.0
      %2250 = vmatpush1.msra.mxu0 0.0
      %2251 = vmatprep.subr.mxu0 0.0
      %2252 = vmatpush1.msra.mxu0 0.0
      %2253 = vmatprep.subr.mxu0 0.0
      %2254 = vmatpush1.msra.mxu0 0.0
      %2255 = vmatprep.subr.mxu0 0.0
      %2256 = vmatpush1.msra.mxu0 0.0
      %2257 = vmatprep.subr.mxu0 0.0
      %2258 = vmatpush1.msra.mxu0 0.0
      %2259 = vmatprep.subr.mxu0 0.0
      %2260 = vmatpush1.msra.mxu0 0.0
      %2261 = vmatprep.subr.mxu0 0.0
      %2262 = vmatpush1.msra.mxu0 0.0
      %2263 = vmatprep.subr.mxu0 0.0
      %2264 = vmatpush1.msra.mxu0 0.0
      %2265 = vmatprep.subr.mxu0 0.0
      %2266 = vmatpush1.msra.mxu0 0.0
      %2267 = vmatprep.subr.mxu0 0.0
      %2268 = vmatpush1.msra.mxu0 0.0
      %2269 = vmatprep.subr.mxu0 0.0
      %2270 = vmatpush1.msra.mxu0 0.0
      %2271 = vmatprep.subr.mxu0 0.0
      %2272 = vmatpush1.msra.mxu0 0.0
      %2273 = vmatprep.subr.mxu0 0.0
      %2274 = vmatpush1.msra.mxu0 0.0
      %2275 = vmatprep.subr.mxu0 0.0
      %2276 = vmatpush1.msra.mxu0 0.0
      %2277 = vmatprep.subr.mxu0 0.0
      %2278 = vmatpush1.msra.mxu0 0.0
      %2279 = vmatprep.subr.mxu0 0.0
      %2280 = vmatpush1.msra.mxu0 0.0
      %2281 = vmatprep.subr.mxu0 0.0
      %2282 = vmatpush1.msra.mxu0 0.0
      %2283 = vmatprep.subr.mxu0 0.0
      %2284 = vmatpush1.msra.mxu0 0.0
      %2285 = vmatprep.subr.mxu0 0.0
      %2286 = vmatpush1.msra.mxu0 0.0
      %2287 = vmatprep.subr.mxu0 0.0
      %2288 = vmatpush1.msra.mxu0 0.0
      %2289 = vmatprep.subr.mxu0 0.0
      %2290 = vmatpush1.msra.mxu0 0.0
      %2291 = vmatprep.subr.mxu0 0.0
      %2292 = vmatpush1.msra.mxu0 0.0
      %2293 = vmatprep.subr.mxu0 0.0
      %2294 = vmatpush1.msra.mxu0 0.0
      %2295 = vmatprep.subr.mxu0 0.0
      %2296 = vmatpush1.msra.mxu0 0.0
      %2297 = vmatprep.subr.mxu0 0.0
      %2298 = vmatpush1.msra.mxu0 0.0
      %2299 = vmatprep.subr.mxu0 0.0
      %2300 = vmatpush1.msra.mxu0 0.0
      %2301 = vmatprep.subr.mxu0 0.0
      %2302 = vmatpush1.msra.mxu0 0.0
      %2303 = vmatprep.subr.mxu0 0.0
      %2304 = vmatpush1.msra.mxu0 0.0
      %2305 = vmatprep.mubr.f32.mxu0 0.0
      %v2306 = vand.u32 %v1595, 4294901760
      %v2307 = vsub.f32 %v1595, %v2306
      %v2308 = vand.u32 %v2307, 4294901760
      %2309 = vmatmul.mubr.f32.gmra.mrb[0].mxu0 %v2308
      %v2310 = vpop.f32.mrb[0].mxu0
      %v2311 = vadd.f32 %v2129, %v2310
      %v2312 = vpop.f32.mrb[0].mxu0
      %2313 = vmatprep.mubr.f32.mxu0 0.0
      %v2314 = vand.u32 %v1598, 4294901760
      %v2315 = vsub.f32 %v1598, %v2314
      %v2316 = vand.u32 %v2315, 4294901760
      %2317 = vmatmul.mubr.f32.gmra.mrb[0].mxu0 %v2316
      %v2318 = vpop.f32.mrb[0].mxu0
      %v2319 = vadd.f32 %v2136, %v2318
      %v2320 = vpop.f32.mrb[0].mxu0
      %2321 = vmatprep.mubr.f32.mxu0 0.0
      %v2322 = vand.u32 %v1601, 4294901760
      %v2323 = vsub.f32 %v1601, %v2322
      %v2324 = vand.u32 %v2323, 4294901760
      %2325 = vmatmul.mubr.f32.gmra.mrb[0].mxu0 %v2324
      %v2326 = vpop.f32.mrb[0].mxu0
      %v2327 = vadd.f32 %v2143, %v2326
      %v2328 = vpop.f32.mrb[0].mxu0
      %2329 = vmatprep.mubr.f32.mxu0 0.0
      %v2330 = vand.u32 %v1604, 4294901760
      %v2331 = vsub.f32 %v1604, %v2330
      %v2332 = vand.u32 %v2331, 4294901760
      %2333 = vmatmul.mubr.f32.gmra.mrb[0].mxu0 %v2332
      %v2334 = vpop.f32.mrb[0].mxu0
      %v2335 = vadd.f32 %v2150, %v2334
      %v2336 = vpop.f32.mrb[0].mxu0
      %2337 = vmatprep.mubr.f32.mxu0 0.0
      %v2338 = vand.u32 %v1607, 4294901760
      %v2339 = vsub.f32 %v1607, %v2338
      %v2340 = vand.u32 %v2339, 4294901760
      %2341 = vmatmul.mubr.f32.gmra.mrb[0].mxu0 %v2340
      %v2342 = vpop.f32.mrb[0].mxu0
      %v2343 = vadd.f32 %v2157, %v2342
      %v2344 = vpop.f32.mrb[0].mxu0
      %2345 = vmatprep.mubr.f32.mxu0 0.0
      %v2346 = vand.u32 %v1610, 4294901760
      %v2347 = vsub.f32 %v1610, %v2346
      %v2348 = vand.u32 %v2347, 4294901760
      %2349 = vmatmul.mubr.f32.gmra.mrb[0].mxu0 %v2348
      %v2350 = vpop.f32.mrb[0].mxu0
      %v2351 = vadd.f32 %v2164, %v2350
      %v2352 = vpop.f32.mrb[0].mxu0
      %2353 = vmatprep.mubr.f32.mxu0 0.0
      %v2354 = vand.u32 %v1613, 4294901760
      %v2355 = vsub.f32 %v1613, %v2354
      %v2356 = vand.u32 %v2355, 4294901760
      %2357 = vmatmul.mubr.f32.gmra.mrb[0].mxu0 %v2356
      %v2358 = vpop.f32.mrb[0].mxu0
      %v2359 = vadd.f32 %v2171, %v2358
      %v2360 = vpop.f32.mrb[0].mxu0
      %2361 = vmatprep.mubr.f32.mxu0 0.0
      %v2362 = vand.u32 %v1616, 4294901760
      %v2363 = vsub.f32 %v1616, %v2362
      %v2364 = vand.u32 %v2363, 4294901760
      %2365 = vmatmul.mubr.f32.gmra.mrb[0].mxu0 %v2364
      %v2366 = vpop.f32.mrb[0].mxu0
      %v2367 = vadd.f32 %v2178, %v2366
      %v2368 = vpop.f32.mrb[0].mxu0
      %2369 = vmatprep.mubr.f32.mxu0 0.0
      %v2370 = vand.u32 %v1619, 4294901760
      %v2371 = vsub.f32 %v1619, %v2370
      %v2372 = vand.u32 %v2371, 4294901760
      %2373 = vmatmul.mubr.f32.gmra.mrb[0].mxu0 %v2372
      %v2374 = vpop.f32.mrb[0].mxu0
      %v2375 = vadd.f32 %v2185, %v2374
      %v2376 = vpop.f32.mrb[0].mxu0
      %2377 = vmatprep.mubr.f32.mxu0 0.0
      %v2378 = vand.u32 %v1622, 4294901760
      %v2379 = vsub.f32 %v1622, %v2378
      %v2380 = vand.u32 %v2379, 4294901760
      %2381 = vmatmul.mubr.f32.gmra.mrb[0].mxu0 %v2380
      %v2382 = vpop.f32.mrb[0].mxu0
      %v2383 = vadd.f32 %v2192, %v2382
      %v2384 = vpop.f32.mrb[0].mxu0
      %2385 = vmatprep.mubr.f32.mxu0 0.0
      %v2386 = vand.u32 %v1625, 4294901760
      %v2387 = vsub.f32 %v1625, %v2386
      %v2388 = vand.u32 %v2387, 4294901760
      %2389 = vmatmul.mubr.f32.gmra.mrb[0].mxu0 %v2388
      %v2390 = vpop.f32.mrb[0].mxu0
      %v2391 = vadd.f32 %v2199, %v2390
      %v2392 = vpop.f32.mrb[0].mxu0
      %2393 = vmatprep.mubr.f32.mxu0 0.0
      %v2394 = vand.u32 %v1628, 4294901760
      %v2395 = vsub.f32 %v1628, %v2394
      %v2396 = vand.u32 %v2395, 4294901760
      %2397 = vmatmul.mubr.f32.gmra.mrb[0].mxu0 %v2396
      %v2398 = vpop.f32.mrb[0].mxu0
      %v2399 = vadd.f32 %v2206, %v2398
      %v2400 = vpop.f32.mrb[0].mxu0
      %2401 = vmatprep.mubr.f32.mxu0 0.0
      %v2402 = vand.u32 %v1631, 4294901760
      %v2403 = vsub.f32 %v1631, %v2402
      %v2404 = vand.u32 %v2403, 4294901760
      %2405 = vmatmul.mubr.f32.gmra.mrb[0].mxu0 %v2404
      %v2406 = vpop.f32.mrb[0].mxu0
      %v2407 = vadd.f32 %v2213, %v2406
      %v2408 = vpop.f32.mrb[0].mxu0
      %2409 = vmatprep.mubr.f32.mxu0 0.0
      %v2410 = vand.u32 %v1634, 4294901760
      %v2411 = vsub.f32 %v1634, %v2410
      %v2412 = vand.u32 %v2411, 4294901760
      %2413 = vmatmul.mubr.f32.gmra.mrb[0].mxu0 %v2412
      %v2414 = vpop.f32.mrb[0].mxu0
      %v2415 = vadd.f32 %v2220, %v2414
      %v2416 = vpop.f32.mrb[0].mxu0
      %2417 = vmatprep.mubr.f32.mxu0 0.0
      %v2418 = vand.u32 %v1637, 4294901760
      %v2419 = vsub.f32 %v1637, %v2418
      %v2420 = vand.u32 %v2419, 4294901760
      %2421 = vmatmul.mubr.f32.gmra.mrb[0].mxu0 %v2420
      %v2422 = vpop.f32.mrb[0].mxu0
      %v2423 = vadd.f32 %v2227, %v2422
      %v2424 = vpop.f32.mrb[0].mxu0
      %2425 = vmatprep.mubr.f32.mxu0 0.0
      %v2426 = vand.u32 %v1640, 4294901760
      %v2427 = vsub.f32 %v1640, %v2426
      %v2428 = vand.u32 %v2427, 4294901760
      %2429 = vmatmul.mubr.f32.gmra.mrb[0].mxu0 %v2428
      %v2430 = vpop.f32.mrb[0].mxu0
      %v2431 = vadd.f32 %v2234, %v2430
      %v2432 = vpop.f32.mrb[0].mxu0
      %2433 = vdwg.mxu0
      %2434 = vmatprep.subr.mxu0 0.0
      %v2435 = vand.u32 %v1582, 4294901760
      %v2436 = vsub.f32 %v1582, %v2435
      %v2437 = vand.u32 %v2436, 4294901760
      %2438 = vmatpush1.msra.mxu0 %v2437
      %2439 = vmatprep.subr.mxu0 0.0
      %v2440 = vand.u32 %v1583, 4294901760
      %v2441 = vsub.f32 %v1583, %v2440
      %v2442 = vand.u32 %v2441, 4294901760
      %2443 = vmatpush1.msra.mxu0 %v2442
      %2444 = vmatprep.subr.mxu0 0.0
      %v2445 = vand.u32 %v1584, 4294901760
      %v2446 = vsub.f32 %v1584, %v2445
      %v2447 = vand.u32 %v2446, 4294901760
      %2448 = vmatpush1.msra.mxu0 %v2447
      %2449 = vmatprep.subr.mxu0 0.0
      %v2450 = vand.u32 %v1585, 4294901760
      %v2451 = vsub.f32 %v1585, %v2450
      %v2452 = vand.u32 %v2451, 4294901760
      %2453 = vmatpush1.msra.mxu0 %v2452
      %2454 = vmatprep.subr.mxu0 0.0
      %2455 = vmatpush1.msra.mxu0 0.0
      %2456 = vmatprep.subr.mxu0 0.0
      %2457 = vmatpush1.msra.mxu0 0.0
      %2458 = vmatprep.subr.mxu0 0.0
      %2459 = vmatpush1.msra.mxu0 0.0
      %2460 = vmatprep.subr.mxu0 0.0
      %2461 = vmatpush1.msra.mxu0 0.0
      %2462 = vmatprep.subr.mxu0 0.0
      %2463 = vmatpush1.msra.mxu0 0.0
      %2464 = vmatprep.subr.mxu0 0.0
      %2465 = vmatpush1.msra.mxu0 0.0
      %2466 = vmatprep.subr.mxu0 0.0
      %2467 = vmatpush1.msra.mxu0 0.0
      %2468 = vmatprep.subr.mxu0 0.0
      %2469 = vmatpush1.msra.mxu0 0.0
      %2470 = vmatprep.subr.mxu0 0.0
      %2471 = vmatpush1.msra.mxu0 0.0
      %2472 = vmatprep.subr.mxu0 0.0
      %2473 = vmatpush1.msra.mxu0 0.0
      %2474 = vmatprep.subr.mxu0 0.0
      %2475 = vmatpush1.msra.mxu0 0.0
      %2476 = vmatprep.subr.mxu0 0.0
      %2477 = vmatpush1.msra.mxu0 0.0
      %2478 = vmatprep.subr.mxu0 0.0
      %2479 = vmatpush1.msra.mxu0 0.0
      %2480 = vmatprep.subr.mxu0 0.0
      %2481 = vmatpush1.msra.mxu0 0.0
      %2482 = vmatprep.subr.mxu0 0.0
      %2483 = vmatpush1.msra.mxu0 0.0
      %2484 = vmatprep.subr.mxu0 0.0
      %2485 = vmatpush1.msra.mxu0 0.0
      %2486 = vmatprep.subr.mxu0 0.0
      %2487 = vmatpush1.msra.mxu0 0.0
      %2488 = vmatprep.subr.mxu0 0.0
      %2489 = vmatpush1.msra.mxu0 0.0
      %2490 = vmatprep.subr.mxu0 0.0
      %2491 = vmatpush1.msra.mxu0 0.0
      %2492 = vmatprep.subr.mxu0 0.0
      %2493 = vmatpush1.msra.mxu0 0.0
      %2494 = vmatprep.subr.mxu0 0.0
      %2495 = vmatpush1.msra.mxu0 0.0
      %2496 = vmatprep.subr.mxu0 0.0
      %2497 = vmatpush1.msra.mxu0 0.0
      %2498 = vmatprep.subr.mxu0 0.0
      %2499 = vmatpush1.msra.mxu0 0.0
      %2500 = vmatprep.subr.mxu0 0.0
      %2501 = vmatpush1.msra.mxu0 0.0
      %2502 = vmatprep.subr.mxu0 0.0
      %2503 = vmatpush1.msra.mxu0 0.0
      %2504 = vmatprep.subr.mxu0 0.0
      %2505 = vmatpush1.msra.mxu0 0.0
      %2506 = vmatprep.subr.mxu0 0.0
      %2507 = vmatpush1.msra.mxu0 0.0
      %2508 = vmatprep.subr.mxu0 0.0
      %2509 = vmatpush1.msra.mxu0 0.0
      %2510 = vmatprep.mubr.f32.mxu0 0.0
      %v2511 = vand.u32 %v1595, 4294901760
      %2512 = vmatmul.mubr.f32.gmra.mrb[0].mxu0 %v2511
      %v2513 = vpop.f32.mrb[0].mxu0
      %v2514 = vadd.f32 %v2311, %v2513
      %v2515 = vpop.f32.mrb[0].mxu0
      %2516 = vmatprep.mubr.f32.mxu0 0.0
      %v2517 = vand.u32 %v1598, 4294901760
      %2518 = vmatmul.mubr.f32.gmra.mrb[0].mxu0 %v2517
      %v2519 = vpop.f32.mrb[0].mxu0
      %v2520 = vadd.f32 %v2319, %v2519
      %v2521 = vpop.f32.mrb[0].mxu0
      %2522 = vmatprep.mubr.f32.mxu0 0.0
      %v2523 = vand.u32 %v1601, 4294901760
      %2524 = vmatmul.mubr.f32.gmra.mrb[0].mxu0 %v2523
      %v2525 = vpop.f32.mrb[0].mxu0
      %v2526 = vadd.f32 %v2327, %v2525
      %v2527 = vpop.f32.mrb[0].mxu0
      %2528 = vmatprep.mubr.f32.mxu0 0.0
      %v2529 = vand.u32 %v1604, 4294901760
      %2530 = vmatmul.mubr.f32.gmra.mrb[0].mxu0 %v2529
      %v2531 = vpop.f32.mrb[0].mxu0
      %v2532 = vadd.f32 %v2335, %v2531
      %v2533 = vpop.f32.mrb[0].mxu0
      %2534 = vmatprep.mubr.f32.mxu0 0.0
      %v2535 = vand.u32 %v1607, 4294901760
      %2536 = vmatmul.mubr.f32.gmra.mrb[0].mxu0 %v2535
      %v2537 = vpop.f32.mrb[0].mxu0
      %v2538 = vadd.f32 %v2343, %v2537
      %v2539 = vpop.f32.mrb[0].mxu0
      %2540 = vmatprep.mubr.f32.mxu0 0.0
      %v2541 = vand.u32 %v1610, 4294901760
      %2542 = vmatmul.mubr.f32.gmra.mrb[0].mxu0 %v2541
      %v2543 = vpop.f32.mrb[0].mxu0
      %v2544 = vadd.f32 %v2351, %v2543
      %v2545 = vpop.f32.mrb[0].mxu0
      %2546 = vmatprep.mubr.f32.mxu0 0.0
      %v2547 = vand.u32 %v1613, 4294901760
      %2548 = vmatmul.mubr.f32.gmra.mrb[0].mxu0 %v2547
      %v2549 = vpop.f32.mrb[0].mxu0
      %v2550 = vadd.f32 %v2359, %v2549
      %v2551 = vpop.f32.mrb[0].mxu0
      %2552 = vmatprep.mubr.f32.mxu0 0.0
      %v2553 = vand.u32 %v1616, 4294901760
      %2554 = vmatmul.mubr.f32.gmra.mrb[0].mxu0 %v2553
      %v2555 = vpop.f32.mrb[0].mxu0
      %v2556 = vadd.f32 %v2367, %v2555
      %v2557 = vpop.f32.mrb[0].mxu0
      %2558 = vmatprep.mubr.f32.mxu0 0.0
      %v2559 = vand.u32 %v1619, 4294901760
      %2560 = vmatmul.mubr.f32.gmra.mrb[0].mxu0 %v2559
      %v2561 = vpop.f32.mrb[0].mxu0
      %v2562 = vadd.f32 %v2375, %v2561
      %v2563 = vpop.f32.mrb[0].mxu0
      %2564 = vmatprep.mubr.f32.mxu0 0.0
      %v2565 = vand.u32 %v1622, 4294901760
      %2566 = vmatmul.mubr.f32.gmra.mrb[0].mxu0 %v2565
      %v2567 = vpop.f32.mrb[0].mxu0
      %v2568 = vadd.f32 %v2383, %v2567
      %v2569 = vpop.f32.mrb[0].mxu0
      %2570 = vmatprep.mubr.f32.mxu0 0.0
      %v2571 = vand.u32 %v1625, 4294901760
      %2572 = vmatmul.mubr.f32.gmra.mrb[0].mxu0 %v2571
      %v2573 = vpop.f32.mrb[0].mxu0
      %v2574 = vadd.f32 %v2391, %v2573
      %v2575 = vpop.f32.mrb[0].mxu0
      %2576 = vmatprep.mubr.f32.mxu0 0.0
      %v2577 = vand.u32 %v1628, 4294901760
      %2578 = vmatmul.mubr.f32.gmra.mrb[0].mxu0 %v2577
      %v2579 = vpop.f32.mrb[0].mxu0
      %v2580 = vadd.f32 %v2399, %v2579
      %v2581 = vpop.f32.mrb[0].mxu0
      %2582 = vmatprep.mubr.f32.mxu0 0.0
      %v2583 = vand.u32 %v1631, 4294901760
      %2584 = vmatmul.mubr.f32.gmra.mrb[0].mxu0 %v2583
      %v2585 = vpop.f32.mrb[0].mxu0
      %v2586 = vadd.f32 %v2407, %v2585
      %v2587 = vpop.f32.mrb[0].mxu0
      %2588 = vmatprep.mubr.f32.mxu0 0.0
      %v2589 = vand.u32 %v1634, 4294901760
      %2590 = vmatmul.mubr.f32.gmra.mrb[0].mxu0 %v2589
      %v2591 = vpop.f32.mrb[0].mxu0
      %v2592 = vadd.f32 %v2415, %v2591
      %v2593 = vpop.f32.mrb[0].mxu0
      %2594 = vmatprep.mubr.f32.mxu0 0.0
      %v2595 = vand.u32 %v1637, 4294901760
      %2596 = vmatmul.mubr.f32.gmra.mrb[0].mxu0 %v2595
      %v2597 = vpop.f32.mrb[0].mxu0
      %v2598 = vadd.f32 %v2423, %v2597
      %v2599 = vpop.f32.mrb[0].mxu0
      %2600 = vmatprep.mubr.f32.mxu0 0.0
      %v2601 = vand.u32 %v1640, 4294901760
      %2602 = vmatmul.mubr.f32.gmra.mrb[0].mxu0 %v2601
      %v2603 = vpop.f32.mrb[0].mxu0
      %v2604 = vadd.f32 %v2431, %v2603
      %v2605 = vpop.f32.mrb[0].mxu0
      %2606 = vdwg.mxu0
      %2607 = vmatprep.subr.mxu0 0.0
      %v2608 = vand.u32 %v1582, 4294901760
      %2609 = vmatpush1.msra.mxu0 %v2608
      %2610 = vmatprep.subr.mxu0 0.0
      %v2611 = vand.u32 %v1583, 4294901760
      %2612 = vmatpush1.msra.mxu0 %v2611
      %2613 = vmatprep.subr.mxu0 0.0
      %v2614 = vand.u32 %v1584, 4294901760
      %2615 = vmatpush1.msra.mxu0 %v2614
      %2616 = vmatprep.subr.mxu0 0.0
      %v2617 = vand.u32 %v1585, 4294901760
      %2618 = vmatpush1.msra.mxu0 %v2617
      %2619 = vmatprep.subr.mxu0 0.0
      %2620 = vmatpush1.msra.mxu0 0.0
      %2621 = vmatprep.subr.mxu0 0.0
      %2622 = vmatpush1.msra.mxu0 0.0
      %2623 = vmatprep.subr.mxu0 0.0
      %2624 = vmatpush1.msra.mxu0 0.0
      %2625 = vmatprep.subr.mxu0 0.0
      %2626 = vmatpush1.msra.mxu0 0.0
      %2627 = vmatprep.subr.mxu0 0.0
      %2628 = vmatpush1.msra.mxu0 0.0
      %2629 = vmatprep.subr.mxu0 0.0
      %2630 = vmatpush1.msra.mxu0 0.0
      %2631 = vmatprep.subr.mxu0 0.0
      %2632 = vmatpush1.msra.mxu0 0.0
      %2633 = vmatprep.subr.mxu0 0.0
      %2634 = vmatpush1.msra.mxu0 0.0
      %2635 = vmatprep.subr.mxu0 0.0
      %2636 = vmatpush1.msra.mxu0 0.0
      %2637 = vmatprep.subr.mxu0 0.0
      %2638 = vmatpush1.msra.mxu0 0.0
      %2639 = vmatprep.subr.mxu0 0.0
      %2640 = vmatpush1.msra.mxu0 0.0
      %2641 = vmatprep.subr.mxu0 0.0
      %2642 = vmatpush1.msra.mxu0 0.0
      %2643 = vmatprep.subr.mxu0 0.0
      %2644 = vmatpush1.msra.mxu0 0.0
      %2645 = vmatprep.subr.mxu0 0.0
      %2646 = vmatpush1.msra.mxu0 0.0
      %2647 = vmatprep.subr.mxu0 0.0
      %2648 = vmatpush1.msra.mxu0 0.0
      %2649 = vmatprep.subr.mxu0 0.0
      %2650 = vmatpush1.msra.mxu0 0.0
      %2651 = vmatprep.subr.mxu0 0.0
      %2652 = vmatpush1.msra.mxu0 0.0
      %2653 = vmatprep.subr.mxu0 0.0
      %2654 = vmatpush1.msra.mxu0 0.0
      %2655 = vmatprep.subr.mxu0 0.0
      %2656 = vmatpush1.msra.mxu0 0.0
      %2657 = vmatprep.subr.mxu0 0.0
      %2658 = vmatpush1.msra.mxu0 0.0
      %2659 = vmatprep.subr.mxu0 0.0
      %2660 = vmatpush1.msra.mxu0 0.0
      %2661 = vmatprep.subr.mxu0 0.0
      %2662 = vmatpush1.msra.mxu0 0.0
      %2663 = vmatprep.subr.mxu0 0.0
      %2664 = vmatpush1.msra.mxu0 0.0
      %2665 = vmatprep.subr.mxu0 0.0
      %2666 = vmatpush1.msra.mxu0 0.0
      %2667 = vmatprep.subr.mxu0 0.0
      %2668 = vmatpush1.msra.mxu0 0.0
      %2669 = vmatprep.subr.mxu0 0.0
      %2670 = vmatpush1.msra.mxu0 0.0
      %2671 = vmatprep.subr.mxu0 0.0
      %2672 = vmatpush1.msra.mxu0 0.0
      %2673 = vmatprep.subr.mxu0 0.0
      %2674 = vmatpush1.msra.mxu0 0.0
      %2675 = vmatprep.mubr.f32.mxu0 0.0
      %v2676 = vand.u32 %v1595, 4294901760
      %2677 = vmatmul.mubr.f32.gmra.mrb[0].mxu0 %v2676
      %v2678 = vpop.f32.mrb[0].mxu0
      %v2679 = vadd.f32 %v2514, %v2678
      %v2680 = vpop.f32.mrb[0].mxu0
      %2681 = vmatprep.mubr.f32.mxu0 0.0
      %v2682 = vand.u32 %v1598, 4294901760
      %2683 = vmatmul.mubr.f32.gmra.mrb[0].mxu0 %v2682
      %v2684 = vpop.f32.mrb[0].mxu0
      %v2685 = vadd.f32 %v2520, %v2684
      %v2686 = vpop.f32.mrb[0].mxu0
      %2687 = vmatprep.mubr.f32.mxu0 0.0
      %v2688 = vand.u32 %v1601, 4294901760
      %2689 = vmatmul.mubr.f32.gmra.mrb[0].mxu0 %v2688
      %v2690 = vpop.f32.mrb[0].mxu0
      %v2691 = vadd.f32 %v2526, %v2690
      %v2692 = vpop.f32.mrb[0].mxu0
      %2693 = vmatprep.mubr.f32.mxu0 0.0
      %v2694 = vand.u32 %v1604, 4294901760
      %2695 = vmatmul.mubr.f32.gmra.mrb[0].mxu0 %v2694
      %v2696 = vpop.f32.mrb[0].mxu0
      %v2697 = vadd.f32 %v2532, %v2696
      %v2698 = vpop.f32.mrb[0].mxu0
      %2699 = vmatprep.mubr.f32.mxu0 0.0
      %v2700 = vand.u32 %v1607, 4294901760
      %2701 = vmatmul.mubr.f32.gmra.mrb[0].mxu0 %v2700
      %v2702 = vpop.f32.mrb[0].mxu0
      %v2703 = vadd.f32 %v2538, %v2702
      %v2704 = vpop.f32.mrb[0].mxu0
      %2705 = vmatprep.mubr.f32.mxu0 0.0
      %v2706 = vand.u32 %v1610, 4294901760
      %2707 = vmatmul.mubr.f32.gmra.mrb[0].mxu0 %v2706
      %v2708 = vpop.f32.mrb[0].mxu0
      %v2709 = vadd.f32 %v2544, %v2708
      %v2710 = vpop.f32.mrb[0].mxu0
      %2711 = vmatprep.mubr.f32.mxu0 0.0
      %v2712 = vand.u32 %v1613, 4294901760
      %2713 = vmatmul.mubr.f32.gmra.mrb[0].mxu0 %v2712
      %v2714 = vpop.f32.mrb[0].mxu0
      %v2715 = vadd.f32 %v2550, %v2714
      %v2716 = vpop.f32.mrb[0].mxu0
      %2717 = vmatprep.mubr.f32.mxu0 0.0
      %v2718 = vand.u32 %v1616, 4294901760
      %2719 = vmatmul.mubr.f32.gmra.mrb[0].mxu0 %v2718
      %v2720 = vpop.f32.mrb[0].mxu0
      %v2721 = vadd.f32 %v2556, %v2720
      %v2722 = vpop.f32.mrb[0].mxu0
      %2723 = vmatprep.mubr.f32.mxu0 0.0
      %v2724 = vand.u32 %v1619, 4294901760
      %2725 = vmatmul.mubr.f32.gmra.mrb[0].mxu0 %v2724
      %v2726 = vpop.f32.mrb[0].mxu0
      %v2727 = vadd.f32 %v2562, %v2726
      %v2728 = vpop.f32.mrb[0].mxu0
      %2729 = vmatprep.mubr.f32.mxu0 0.0
      %v2730 = vand.u32 %v1622, 4294901760
      %2731 = vmatmul.mubr.f32.gmra.mrb[0].mxu0 %v2730
      %v2732 = vpop.f32.mrb[0].mxu0
      %v2733 = vadd.f32 %v2568, %v2732
      %v2734 = vpop.f32.mrb[0].mxu0
      %2735 = vmatprep.mubr.f32.mxu0 0.0
      %v2736 = vand.u32 %v1625, 4294901760
      %2737 = vmatmul.mubr.f32.gmra.mrb[0].mxu0 %v2736
      %v2738 = vpop.f32.mrb[0].mxu0
      %v2739 = vadd.f32 %v2574, %v2738
      %v2740 = vpop.f32.mrb[0].mxu0
      %2741 = vmatprep.mubr.f32.mxu0 0.0
      %v2742 = vand.u32 %v1628, 4294901760
      %2743 = vmatmul.mubr.f32.gmra.mrb[0].mxu0 %v2742
      %v2744 = vpop.f32.mrb[0].mxu0
      %v2745 = vadd.f32 %v2580, %v2744
      %v2746 = vpop.f32.mrb[0].mxu0
      %2747 = vmatprep.mubr.f32.mxu0 0.0
      %v2748 = vand.u32 %v1631, 4294901760
      %2749 = vmatmul.mubr.f32.gmra.mrb[0].mxu0 %v2748
      %v2750 = vpop.f32.mrb[0].mxu0
      %v2751 = vadd.f32 %v2586, %v2750
      %v2752 = vpop.f32.mrb[0].mxu0
      %2753 = vmatprep.mubr.f32.mxu0 0.0
      %v2754 = vand.u32 %v1634, 4294901760
      %2755 = vmatmul.mubr.f32.gmra.mrb[0].mxu0 %v2754
      %v2756 = vpop.f32.mrb[0].mxu0
      %v2757 = vadd.f32 %v2592, %v2756
      %v2758 = vpop.f32.mrb[0].mxu0
      %2759 = vmatprep.mubr.f32.mxu0 0.0
      %v2760 = vand.u32 %v1637, 4294901760
      %2761 = vmatmul.mubr.f32.gmra.mrb[0].mxu0 %v2760
      %v2762 = vpop.f32.mrb[0].mxu0
      %v2763 = vadd.f32 %v2598, %v2762
      %v2764 = vpop.f32.mrb[0].mxu0
      %2765 = vmatprep.mubr.f32.mxu0 0.0
      %v2766 = vand.u32 %v1640, 4294901760
      %2767 = vmatmul.mubr.f32.gmra.mrb[0].mxu0 %v2766
      %v2768 = vpop.f32.mrb[0].mxu0
      %v2769 = vadd.f32 %v2604, %v2768
      %v2770 = vpop.f32.mrb[0].mxu0
      %2771 = vdwg.mxu0
      %2772 = vst [vmem:[%s199] sm:$0xff] %v2679
      %2773 = vst [vmem:[%s199 + $0x8] sm:$0xff] %v2685
      %2774 = vst [vmem:[%s199 + $0x10] sm:$0xff] %v2691
      %2775 = vst [vmem:[%s199 + $0x18] sm:$0xff] %v2697
      %2776 = vst [vmem:[%s199 + $0x20] sm:$0xff] %v2703
      %2777 = vst [vmem:[%s199 + $0x28] sm:$0xff] %v2709
      %2778 = vst [vmem:[%s199 + $0x30] sm:$0xff] %v2715
      %2779 = vst [vmem:[%s199 + $0x38] sm:$0xff] %v2721
      %2780 = vst [vmem:[%s199 + $0x40] sm:$0xff] %v2727
      %2781 = vst [vmem:[%s199 + $0x48] sm:$0xff] %v2733
      %2782 = vst [vmem:[%s199 + $0x50] sm:$0xff] %v2739
      %2783 = vst [vmem:[%s199 + $0x58] sm:$0xff] %v2745
      %2784 = vst [vmem:[%s199 + $0x60] sm:$0xff] %v2751
      %2785 = vst [vmem:[%s199 + $0x68] sm:$0xff] %v2757
      %2786 = vst [vmem:[%s199 + $0x70] sm:$0xff] %v2763
      %2787 = vst [vmem:[%s199 + $0x78] sm:$0xff] %v2769
      %s2788 = smul.u32 16, %s15
      %p2789 = scmp.lt.s32.totalorder %s2788, 31
      %s2790 = scalar_select %p2789, %s2788, 31
      %s2791 = smul.addr %s2790, 8
      %s2792 = scalar_lea.vmem %s4, %s2791
      // Predicated region
      $region37: #{_emb_ann_call.1} parent=35 // pred_check
        %p2793 = pneg %p122
      $region38: #{_emb_ann_call.1} parent=35 // pred_check_branch
        %2795 = sbr.rel (%p2793) target = $region40
      $region39: #{_emb_ann_call.1} parent=35 // pred_region
        %s2796 = smul.u32 16, %s15
      $region40: #{_emb_ann_call.1} parent=35 // pred_fallthru
        _
    $region36: #{_emb_ann_call.1} parent=5 // pred_fallthru
      _
    %p2797 = scmp.le.s32.totalorder 2, %s10
    // Predicated region
    $region41: #{_emb_ann_call.1} parent=5 // pred_check
      %p2798 = pneg %p2797
    $region42: #{_emb_ann_call.1} parent=5 // pred_check_branch
      %2800 = sbr.rel (%p2798) target = $region44
    $region43: #{_emb_ann_call.1} parent=5 // pred_region
      %s2801 = ssub.s32 %s10, 2
      // Predicated region
      $region45: #{_emb_ann_call.1} parent=43 // pred_check
        %p2802 = pneg %p128
      $region46: #{_emb_ann_call.1} parent=43 // pred_check_branch
        %2804 = sbr.rel (%p2802) target = $region48
      $region47: #{_emb_ann_call.1} parent=43 // pred_region
        %s2805 = smul.u32 16, %s16
        %p2806 = scmp.lt.s32.totalorder %s2805, 31
        %s2807 = scalar_select %p2806, %s2805, 31
        %s2808 = smul.addr %s2807, 8
        %s2809 = scalar_lea.vmem %s4, %s2808
      $region48: #{_emb_ann_call.1} parent=43 // pred_fallthru
        _
    $region44: #{_emb_ann_call.1} parent=5 // pred_fallthru
      _
  $region6: #{_emb_ann_call.1} parent=0 // loop_footer
    %s14 = sadd.s32 1, %s10
  $region7: #{_emb_ann_call.1} parent=0 // loop_footer_branch
    %9 = sbr.rel target = $region3
  $region8: #{_emb_ann_call.1} parent=0 // loop_exit
    _

</llo_original>
